<compile_context>
chip_gen: v6e
topology: v6e:2x2x1
jax: 0.10.0
libtpu: 0.0.40
codegen_flags: <defaults>
</compile_context>

<pallas_src>
import functools

import jax
import jax.numpy as jnp
from jax.experimental import pallas as pl
from jax.experimental.pallas import tpu as pltpu


def _round_up(v, m):
    return ((v + m - 1) // m) * m


def _pick_row_tile(n_pad):
    for t in (512, 256, 128):
        if n_pad % t == 0:
            return t
    return n_pad


def _pad2(a, rows, cols):
    return jnp.pad(a, ((0, rows - a.shape[0]), (0, cols - a.shape[1])))


# ---------------------------------------------------------------------------
# Fused Pallas kernel: all GATConv layers, grid = (num_layers, num_row_tiles).
# ---------------------------------------------------------------------------
def _gat_fused_kernel(loga_ref, x_ref, w_ref, asrc_ref, adst_ref, b_ref,
                      trace_ref, x_scr, h_scr, asrc_scr, *,
                      num_layers, tile_n, last_activation, negative_slope):
    # loga_ref:  [tile_n, Np]    log(edge count) dst-row slab; -1e30 where no edge
    # x_ref:     [Np, Fp]        zero-padded input features (read at layer 0 only)
    # w_ref:     [1, Fp, Fp]     this layer's lin weight (bf16, zero-padded)
    # asrc_ref:  [1, 1, Fp]      att_src (f32, zero-padded)
    # adst_ref:  [1, 1, Fp]      att_dst (f32, zero-padded)
    # b_ref:     [1, 1, Fp]      bias    (f32, zero-padded)
    # trace_ref: [1, tile_n, Fp] this (layer, row-tile) output slab (lane-dense)
    # x_scr:     [Np, Fp] f32    activations carried across layers
    # h_scr:     [Np, Fp] bf16   lin-transformed features of the current layer
    # asrc_scr:  [1, Np]  f32    <h_j, att_src> for all nodes j (current layer)
    l = pl.program_id(0)
    r = pl.program_id(1)

    @pl.when(jnp.logical_and(l == 0, r == 0))
    def _():
        x_scr[...] = x_ref[...]

    @pl.when(r == 0)
    def _():
        # Linear transform for the whole layer, once per layer (bf16 MXU, f32 acc).
        h_f32 = jnp.dot(x_scr[...].astype(jnp.bfloat16), w_ref[0],
                        preferred_element_type=jnp.float32)              # [Np, Fp]
        h_scr[...] = h_f32.astype(jnp.bfloat16)
        # Source attention logits for all nodes: <h_j, att_src> -> [1, Np].
        asrc_scr[...] = jax.lax.dot_general(
            asrc_ref[0], h_f32, (((1,), (1,)), ((), ())),
            preferred_element_type=jnp.float32)

    row0 = pl.multiple_of(r * tile_n, tile_n)
    h_all = h_scr[...]                                                    # [Np, Fp] bf16
    h_rows = h_scr[pl.ds(row0, tile_n), :].astype(jnp.float32)            # [tile_n, Fp]

    # Attention logits for this dst-row slab.
    a_dst = jnp.sum(h_rows * adst_ref[0], axis=-1, keepdims=True)         # [tile_n, 1]
    e = a_dst + asrc_scr[...]                                             # [tile_n, Np]
    e = jnp.where(e > 0, e, negative_slope * e)                           # LeakyReLU
    e = e + loga_ref[...]              # + log(multiplicity); -1e30 masks non-edges

    # Stable softmax numerator; normalization folded after the matmul.
    m = jnp.max(e, axis=-1, keepdims=True)
    p = jnp.exp(e - m)                                                    # [tile_n, Np]
    den = jnp.sum(p, axis=-1, keepdims=True)

    agg = jnp.dot(p.astype(jnp.bfloat16), h_all,
                  preferred_element_type=jnp.float32)                     # [tile_n, Fp]
    out = agg * pl.reciprocal(den, approx=True) + b_ref[0]

    # Activation (ReLU); skipped on the last layer iff last_activation=False.
    if last_activation:
        act = jnp.maximum(out, 0.0)
        trace_ref[0] = act
        x_scr[pl.ds(row0, tile_n), :] = act
    else:
        is_last = l == num_layers - 1

        @pl.when(is_last)
        def _():
            trace_ref[0] = out
            x_scr[pl.ds(row0, tile_n), :] = out

        @pl.when(jnp.logical_not(is_last))
        def _():
            act = jnp.maximum(out, 0.0)
            trace_ref[0] = act
            x_scr[pl.ds(row0, tile_n), :] = act


# ---------------------------------------------------------------------------
# Host-side adjacency: log(edge-count) matrix (dst x src) with GATConv-style
# self loops (existing self loops removed, exactly one added per node).
# Padded (fake) nodes only get a self loop, so they stay inert and finite.
# ---------------------------------------------------------------------------
def build_log_adjacency(edge_index, num_nodes_pad):
    src = edge_index[0]
    dst = edge_index[1]
    not_self = (src != dst).astype(jnp.float32)
    cnt = jnp.zeros((num_nodes_pad, num_nodes_pad), jnp.float32)
    cnt = cnt.at[dst, src].add(not_self)
    cnt = cnt + jnp.eye(num_nodes_pad, dtype=jnp.float32)
    return jnp.where(cnt > 0, jnp.log(cnt), jnp.float32(-1e30))


# ---------------------------------------------------------------------------
# GAT_Encoder parameters + fused forward (eval mode: dropout=id, norm=id).
# ---------------------------------------------------------------------------
def init_gat_encoder_params(key, input_dim, layer_num, hidden_size, output_dim):
    dims = []
    if layer_num > 1:
        dims.append((input_dim, hidden_size))
        for _ in range(layer_num - 2):
            dims.append((hidden_size, hidden_size))
        dims.append((hidden_size, output_dim))
    else:
        dims.append((input_dim, output_dim))

    params = []
    for (fin, fout) in dims:
        key, k1, k2, k3, k4 = jax.random.split(key, 5)
        scale = 1.0 / jnp.sqrt(jnp.float32(fin))
        params.append({
            "w": jax.random.uniform(k1, (fin, fout), jnp.float32, -scale, scale),
            "att_src": jax.random.uniform(k2, (1, fout), jnp.float32, -scale, scale),
            "att_dst": jax.random.uniform(k3, (1, fout), jnp.float32, -scale, scale),
            "bias": jax.random.uniform(k4, (1, fout), jnp.float32, -scale, scale),
        })
    return params


def gat_encoder_forward(params, x, edge_index, *, last_activation=True,
                        negative_slope=0.2):
    num_layers = len(params)
    n = x.shape[0]
    f_out = params[-1]["w"].shape[1]
    # torch.stack(trace) requires all layer outputs to share the same width.
    assert all(p["w"].shape[1] == f_out for p in params)

    # Lane-dense padded sizes (multiples of 128 for features AND nodes).
    feat_dims = [x.shape[1]] + [p["w"].shape[1] for p in params]
    fp = _round_up(max(max(feat_dims), 128), 128)
    n_pad = _round_up(max(n, 128), 128)
    tile_n = _pick_row_tile(n_pad)
    num_row_tiles = n_pad // tile_n

    # Stacked zero-padded per-layer parameters; weights streamed as bf16.
    w_all = jnp.stack([_pad2(p["w"], fp, fp) for p in params]).astype(jnp.bfloat16)
    asrc_all = jnp.stack([_pad2(p["att_src"], 1, fp) for p in params])
    adst_all = jnp.stack([_pad2(p["att_dst"], 1, fp) for p in params])
    b_all = jnp.stack([_pad2(p["bias"], 1, fp) for p in params])

    x_pad = _pad2(x.astype(jnp.float32), n_pad, fp)
    log_adj = build_log_adjacency(edge_index, n_pad)

    kernel = functools.partial(
        _gat_fused_kernel,
        num_layers=num_layers,
        tile_n=tile_n,
        last_activation=bool(last_activation),
        negative_slope=float(negative_slope),   # plain Python float: no captured consts
    )

    # Generation-aware VMEM limit (v7x: 64 MiB physical; v5e/v6e: 128 MiB).
    try:
        vmem_phys = int(pltpu.get_tpu_info().vmem_capacity_bytes)
    except Exception:
        vmem_phys = 64 * 1024 * 1024
    vmem_limit = min(vmem_phys * 3 // 4, 96 * 1024 * 1024)

    trace_p = pl.pallas_call(
        kernel,
        out_shape=jax.ShapeDtypeStruct((num_layers, n_pad, fp), jnp.float32),
        grid=(num_layers, num_row_tiles),
        in_specs=[
            pl.BlockSpec((tile_n, n_pad), lambda l, r: (r, 0)),   # log-adjacency row slab
            pl.BlockSpec((n_pad, fp), lambda l, r: (0, 0)),       # input x (layer 0 only)
            pl.BlockSpec((1, fp, fp), lambda l, r: (l, 0, 0)),    # per-layer W (bf16)
            pl.BlockSpec((1, 1, fp), lambda l, r: (l, 0, 0)),     # per-layer att_src
            pl.BlockSpec((1, 1, fp), lambda l, r: (l, 0, 0)),     # per-layer att_dst
            pl.BlockSpec((1, 1, fp), lambda l, r: (l, 0, 0)),     # per-layer bias
        ],
        out_specs=pl.BlockSpec((1, tile_n, fp), lambda l, r: (l, r, 0)),
        scratch_shapes=[
            pltpu.VMEM((n_pad, fp), jnp.float32),    # x_scr: activations carried across layers
            pltpu.VMEM((n_pad, fp), jnp.bfloat16),   # h_scr: this layer's lin-transformed feats
            pltpu.VMEM((1, n_pad), jnp.float32),     # asrc_scr: <h_j, att_src> for all j
        ],
        compiler_params=pltpu.CompilerParams(
            # Both axes are serially dependent through the VMEM carries (x_scr/h_scr).
            dimension_semantics=("arbitrary", "arbitrary"),
            vmem_limit_bytes=vmem_limit,
        ),
    )(log_adj, x_pad, w_all, asrc_all, adst_all, b_all)

    if n_pad != n or fp != f_out:
        trace = trace_p[:, :n, :f_out]
    else:
        trace = trace_p
    # Dropout is identity in eval mode -> returned x == trace[-1].
    return trace[-1], trace


# ---------------------------------------------------------------------------
# Pure-JAX reference (same math, full f32, no Pallas) for a sanity check.
# ---------------------------------------------------------------------------
def gat_encoder_reference(params, x, edge_index, *, last_activation=True,
                          negative_slope=0.2):
    n = x.shape[0]
    src, dst = edge_index[0], edge_index[1]
    not_self = (src != dst).astype(jnp.float32)
    cnt = jnp.zeros((n, n), jnp.float32).at[dst, src].add(not_self)
    cnt = cnt + jnp.eye(n, dtype=jnp.float32)

    num_layers = len(params)
    trace = []
    h_in = x.astype(jnp.float32)
    for i, p in enumerate(params):
        h = h_in @ p["w"]
        a_src = (h * p["att_src"]).sum(-1)   # [N]
        a_dst = (h * p["att_dst"]).sum(-1)   # [N]
        e = a_dst[:, None] + a_src[None, :]
        e = jnp.where(e > 0, e, negative_slope * e)
        e = jnp.where(cnt > 0, e, -1e30)
        m = e.max(-1, keepdims=True)
        pexp = cnt * jnp.exp(e - m)
        alpha = pexp / pexp.sum(-1, keepdims=True)
        out = alpha @ h + p["bias"]
        if not (i == num_layers - 1 and not last_activation):
            out = jnp.maximum(out, 0.0)
        trace.append(out)
        h_in = out
    return h_in, jnp.stack(trace, axis=0)


if __name__ == "__main__":
    # Small synthetic graph with the module's default widths (hidden=output=128
    # so the torch.stack of the trace is valid and the outputs are lane-dense).
    N = 64
    INPUT_DIM = 32
    HIDDEN = 128
    OUTPUT_DIM = 128
    LAYER_NUM = 2
    NUM_EDGES = 256

    key = jax.random.PRNGKey(0)
    kx, ke, kp = jax.random.split(key, 3)

    x = jax.random.normal(kx, (N, INPUT_DIM), jnp.float32)
    edge_index = jax.random.randint(ke, (2, NUM_EDGES), 0, N, jnp.int32)

    params = init_gat_encoder_params(kp, INPUT_DIM, LAYER_NUM, HIDDEN, OUTPUT_DIM)

    out, trace = gat_encoder_forward(params, x, edge_index, last_activation=True)
    out = jax.block_until_ready(out)
    trace = jax.block_until_ready(trace)

    ref_out, ref_trace = gat_encoder_reference(params, x, edge_index,
                                               last_activation=True)

    assert out.shape == (N, OUTPUT_DIM)
    assert trace.shape == (LAYER_NUM, N, OUTPUT_DIM)
    # bf16 MXU operands + approximate reciprocal -> modest tolerance vs f32 ref.
    assert jnp.allclose(out, ref_out, atol=3e-2, rtol=3e-2)
    assert jnp.allclose(trace, ref_trace, atol=3e-2, rtol=3e-2)

    print("KERNEL_OK")
</pallas_src>

<mosaic_0001>
module attributes {stable_mosaic.version = 11 : i64} {
  func.func @_gat_fused_kernel(%arg0: i32, %arg1: i32, %arg2: memref<128x128xf32, #tpu.memory_space<vmem>>, %arg3: memref<128x128xf32, #tpu.memory_space<vmem>>, %arg4: memref<1x128x128xbf16, #tpu.memory_space<vmem>>, %arg5: memref<1x1x128xf32, #tpu.memory_space<vmem>>, %arg6: memref<1x1x128xf32, #tpu.memory_space<vmem>>, %arg7: memref<1x1x128xf32, #tpu.memory_space<vmem>>, %arg8: memref<1x128x128xf32, #tpu.memory_space<vmem>>, %arg9: memref<128x128xf32, #tpu.memory_space<vmem>>, %arg10: memref<128x128xbf16, #tpu.memory_space<vmem>>, %arg11: memref<1x128xf32, #tpu.memory_space<vmem>>) attributes {dimension_semantics = [#tpu.dimension_semantics<arbitrary>, #tpu.dimension_semantics<arbitrary>], iteration_bounds = array<i64: 2, 1>, scalar_prefetch = 0 : i64, scratch_operands = 3 : i64, tpu.core_type = #tpu.core_type<tc>, window_params = [{transform_indices = @transform_0, window_bounds = array<i64: 128, 128>}, {pipeline_mode = #tpu.pipeline_mode<synchronous>, transform_indices = @transform_1, window_bounds = array<i64: 128, 128>}, {transform_indices = @transform_2, window_bounds = array<i64: 1, 128, 128>}, {transform_indices = @transform_3, window_bounds = array<i64: 1, 1, 128>}, {transform_indices = @transform_4, window_bounds = array<i64: 1, 1, 128>}, {transform_indices = @transform_5, window_bounds = array<i64: 1, 1, 128>}, {transform_indices = @transform_6, window_bounds = array<i64: 1, 128, 128>}]} {
    %c0_i32 = arith.constant 0 : i32
    %0 = arith.cmpi eq, %arg0, %c0_i32 : i32
    %c0_i32_0 = arith.constant 0 : i32
    %1 = arith.cmpi eq, %arg1, %c0_i32_0 : i32
    %2 = arith.andi %0, %1 : i1
    %3 = arith.extui %2 : i1 to i32
    %c0_i32_1 = arith.constant 0 : i32
    %4 = arith.cmpi ne, %3, %c0_i32_1 : i32
    scf.if %4 {
      %c0_26 = arith.constant 0 : index
      %c0_27 = arith.constant 0 : index
      %54 = vector.load %arg3[%c0_26, %c0_27] : memref<128x128xf32, #tpu.memory_space<vmem>>, vector<128x128xf32>
      %c0_28 = arith.constant 0 : index
      %c0_29 = arith.constant 0 : index
      %55 = vector.load %arg9[%c0_28, %c0_29] : memref<128x128xf32, #tpu.memory_space<vmem>>, vector<128x128xf32>
      tpu.vector_store %arg9[%c0_28, %c0_29], %54 {strides = array<i32>} : memref<128x128xf32, #tpu.memory_space<vmem>>, vector<128x128xf32>,
    } else {
    }
    %c0_i32_2 = arith.constant 0 : i32
    %5 = arith.cmpi eq, %arg1, %c0_i32_2 : i32
    %6 = arith.extui %5 : i1 to i32
    %c0_i32_3 = arith.constant 0 : i32
    %7 = arith.cmpi ne, %6, %c0_i32_3 : i32
    scf.if %7 {
      %c0_26 = arith.constant 0 : index
      %c0_27 = arith.constant 0 : index
      %54 = vector.load %arg9[%c0_26, %c0_27] : memref<128x128xf32, #tpu.memory_space<vmem>>, vector<128x128xf32>
      %55 = arith.truncf %54 : vector<128x128xf32> to vector<128x128xbf16>
      %c0_28 = arith.constant 0 : index
      %c0_29 = arith.constant 0 : index
      %c0_30 = arith.constant 0 : index
      %56 = vector.load %arg4[%c0_28, %c0_29, %c0_30] : memref<1x128x128xbf16, #tpu.memory_space<vmem>>, vector<1x128x128xbf16>
      %57 = vector.shape_cast %56 : vector<1x128x128xbf16> to vector<128x128xbf16>
      %cst_31 = arith.constant dense<0.000000e+00> : vector<128x128xf32>
      %58 = tpu.matmul %55, %57, %cst_31 {dimension_numbers = #tpu.dot_dimension_numbers<[1], [0], [0], [1], [0, 0, 1, 1], [], []>} : vector<128x128xbf16>, vector<128x128xbf16>, vector<128x128xf32> -> vector<128x128xf32>
      %59 = arith.truncf %58 : vector<128x128xf32> to vector<128x128xbf16>
      %c0_32 = arith.constant 0 : index
      %c0_33 = arith.constant 0 : index
      %60 = vector.load %arg10[%c0_32, %c0_33] : memref<128x128xbf16, #tpu.memory_space<vmem>>, vector<128x128xbf16>
      tpu.vector_store %arg10[%c0_32, %c0_33], %59 {strides = array<i32>} : memref<128x128xbf16, #tpu.memory_space<vmem>>, vector<128x128xbf16>,
      %c0_34 = arith.constant 0 : index
      %c0_35 = arith.constant 0 : index
      %c0_36 = arith.constant 0 : index
      %61 = vector.load %arg5[%c0_34, %c0_35, %c0_36] : memref<1x1x128xf32, #tpu.memory_space<vmem>>, vector<1x1x128xf32>
      %62 = vector.shape_cast %61 : vector<1x1x128xf32> to vector<1x128xf32>
      %cst_37 = arith.constant dense<0.000000e+00> : vector<1x128xf32>
      %63 = tpu.matmul %62, %58, %cst_37 {dimension_numbers = #tpu.dot_dimension_numbers<[1], [1], [0], [0], [0, 0, 1, 0], [], []>} : vector<1x128xf32>, vector<128x128xf32>, vector<1x128xf32> -> vector<1x128xf32>
      %c0_38 = arith.constant 0 : index
      %c0_39 = arith.constant 0 : index
      %64 = vector.load %arg11[%c0_38, %c0_39] : memref<1x128xf32, #tpu.memory_space<vmem>>, vector<1x128xf32>
      tpu.vector_store %arg11[%c0_38, %c0_39], %63 {strides = array<i32>} : memref<1x128xf32, #tpu.memory_space<vmem>>, vector<1x128xf32>,
    } else {
    }
    %c128_i32 = arith.constant 128 : i32
    %8 = arith.muli %arg1, %c128_i32 : i32
    %9 = tpu.assume_multiple %8, 128 : i32
    %c0 = arith.constant 0 : index
    %c0_4 = arith.constant 0 : index
    %10 = vector.load %arg10[%c0, %c0_4] : memref<128x128xbf16, #tpu.memory_space<vmem>>, vector<128x128xbf16>
    %11 = arith.index_cast %9 : i32 to index
    %c0_5 = arith.constant 0 : index
    %12 = vector.load %arg10[%11, %c0_5] : memref<128x128xbf16, #tpu.memory_space<vmem>>, vector<128x128xbf16>
    %13 = arith.extf %12 : vector<128x128xbf16> to vector<128x128xf32>
    %c0_6 = arith.constant 0 : index
    %c0_7 = arith.constant 0 : index
    %c0_8 = arith.constant 0 : index
    %14 = vector.load %arg6[%c0_6, %c0_7, %c0_8] : memref<1x1x128xf32, #tpu.memory_space<vmem>>, vector<1x1x128xf32>
    %15 = vector.shape_cast %14 : vector<1x1x128xf32> to vector<1x128xf32>
    %16 = vector.broadcast %15 : vector<1x128xf32> to vector<128x128xf32>
    %17 = arith.mulf %13, %16 : vector<128x128xf32>
    %cst = arith.constant dense<0.000000e+00> : vector<128xf32>
    %18 = vector.multi_reduction <add>, %17, %cst [1] : vector<128x128xf32> to vector<128xf32>
    %19 = vector.shape_cast %18 : vector<128xf32> to vector<128x1xf32>
    %c0_9 = arith.constant 0 : index
    %c0_10 = arith.constant 0 : index
    %20 = vector.load %arg11[%c0_9, %c0_10] : memref<1x128xf32, #tpu.memory_space<vmem>>, vector<1x128xf32>
    %21 = vector.broadcast %19 : vector<128x1xf32> to vector<128x128xf32>
    %22 = vector.broadcast %20 : vector<1x128xf32> to vector<128x128xf32>
    %23 = arith.addf %21, %22 : vector<128x128xf32>
    %cst_11 = arith.constant 0.000000e+00 : f32
    %24 = vector.broadcast %cst_11 : f32 to vector<128x128xf32>
    %25 = arith.cmpf ogt, %23, %24 : vector<128x128xf32>
    %cst_12 = arith.constant 2.000000e-01 : f32
    %26 = vector.broadcast %cst_12 : f32 to vector<128x128xf32>
    %27 = arith.mulf %26, %23 : vector<128x128xf32>
    %28 = arith.select %25, %23, %27 : vector<128x128xi1>, vector<128x128xf32>
    %c0_13 = arith.constant 0 : index
    %c0_14 = arith.constant 0 : index
    %29 = vector.load %arg2[%c0_13, %c0_14] : memref<128x128xf32, #tpu.memory_space<vmem>>, vector<128x128xf32>
    %30 = arith.addf %28, %29 : vector<128x128xf32>
    %cst_15 = arith.constant dense<0xFF800000> : vector<128xf32>
    %31 = vector.multi_reduction <maximumf>, %30, %cst_15 [1] : vector<128x128xf32> to vector<128xf32>
    %32 = vector.shape_cast %31 : vector<128xf32> to vector<128x1xf32>
    %33 = vector.broadcast %32 : vector<128x1xf32> to vector<128x128xf32>
    %34 = arith.subf %30, %33 : vector<128x128xf32>
    %35 = math.exp %34 : vector<128x128xf32>
    %cst_16 = arith.constant dense<0.000000e+00> : vector<128xf32>
    %36 = vector.multi_reduction <add>, %35, %cst_16 [1] : vector<128x128xf32> to vector<128xf32>
    %37 = vector.shape_cast %36 : vector<128xf32> to vector<128x1xf32>
    %38 = arith.truncf %35 : vector<128x128xf32> to vector<128x128xbf16>
    %cst_17 = arith.constant dense<0.000000e+00> : vector<128x128xf32>
    %39 = tpu.matmul %38, %10, %cst_17 {dimension_numbers = #tpu.dot_dimension_numbers<[1], [0], [0], [1], [0, 0, 1, 1], [], []>} : vector<128x128xbf16>, vector<128x128xbf16>, vector<128x128xf32> -> vector<128x128xf32>
    %40 = tpu.reciprocal %37 {approx = true} : vector<128x1xf32> -> vector<128x1xf32>
    %41 = vector.broadcast %40 : vector<128x1xf32> to vector<128x128xf32>
    %42 = arith.mulf %39, %41 : vector<128x128xf32>
    %c0_18 = arith.constant 0 : index
    %c0_19 = arith.constant 0 : index
    %c0_20 = arith.constant 0 : index
    %43 = vector.load %arg7[%c0_18, %c0_19, %c0_20] : memref<1x1x128xf32, #tpu.memory_space<vmem>>, vector<1x1x128xf32>
    %44 = vector.shape_cast %43 : vector<1x1x128xf32> to vector<1x128xf32>
    %45 = vector.broadcast %44 : vector<1x128xf32> to vector<128x128xf32>
    %46 = arith.addf %42, %45 : vector<128x128xf32>
    %cst_21 = arith.constant 0.000000e+00 : f32
    %47 = vector.broadcast %cst_21 : f32 to vector<128x128xf32>
    %48 = arith.maximumf %46, %47 : vector<128x128xf32>
    %c0_22 = arith.constant 0 : index
    %c0_23 = arith.constant 0 : index
    %c0_24 = arith.constant 0 : index
    %49 = vector.load %arg8[%c0_22, %c0_23, %c0_24] : memref<1x128x128xf32, #tpu.memory_space<vmem>>, vector<1x128x128xf32>
    %50 = vector.shape_cast %49 : vector<1x128x128xf32> to vector<128x128xf32>
    %51 = vector.shape_cast %48 : vector<128x128xf32> to vector<1x128x128xf32>
    tpu.vector_store %arg8[%c0_22, %c0_23, %c0_24], %51 {strides = array<i32>} : memref<1x128x128xf32, #tpu.memory_space<vmem>>, vector<1x128x128xf32>,
    %52 = arith.index_cast %9 : i32 to index
    %c0_25 = arith.constant 0 : index
    %53 = vector.load %arg9[%52, %c0_25] : memref<128x128xf32, #tpu.memory_space<vmem>>, vector<128x128xf32>
    tpu.vector_store %arg9[%52, %c0_25], %48 {strides = array<i32>} : memref<128x128xf32, #tpu.memory_space<vmem>>, vector<128x128xf32>,
    return
  }
  func.func @transform_0(%arg0: i32, %arg1: i32) -> (i32, i32) {
    %c0_i32 = arith.constant 0 : i32
    %c0_i32_0 = arith.constant 0 : i32
    return %arg1, %c0_i32 : i32, i32
  }
  func.func @transform_1(%arg0: i32, %arg1: i32) -> (i32, i32) {
    %c0_i32 = arith.constant 0 : i32
    %c0_i32_0 = arith.constant 0 : i32
    %c0_i32_1 = arith.constant 0 : i32
    return %c0_i32, %c0_i32_0 : i32, i32
  }
  func.func @transform_2(%arg0: i32, %arg1: i32) -> (i32, i32, i32) {
    %c0_i32 = arith.constant 0 : i32
    %c0_i32_0 = arith.constant 0 : i32
    %c0_i32_1 = arith.constant 0 : i32
    return %arg0, %c0_i32, %c0_i32_0 : i32, i32, i32
  }
  func.func @transform_3(%arg0: i32, %arg1: i32) -> (i32, i32, i32) {
    %c0_i32 = arith.constant 0 : i32
    %c0_i32_0 = arith.constant 0 : i32
    %c0_i32_1 = arith.constant 0 : i32
    return %arg0, %c0_i32, %c0_i32_0 : i32, i32, i32
  }
  func.func @transform_4(%arg0: i32, %arg1: i32) -> (i32, i32, i32) {
    %c0_i32 = arith.constant 0 : i32
    %c0_i32_0 = arith.constant 0 : i32
    %c0_i32_1 = arith.constant 0 : i32
    return %arg0, %c0_i32, %c0_i32_0 : i32, i32, i32
  }
  func.func @transform_5(%arg0: i32, %arg1: i32) -> (i32, i32, i32) {
    %c0_i32 = arith.constant 0 : i32
    %c0_i32_0 = arith.constant 0 : i32
    %c0_i32_1 = arith.constant 0 : i32
    return %arg0, %c0_i32, %c0_i32_0 : i32, i32, i32
  }
  func.func @transform_6(%arg0: i32, %arg1: i32) -> (i32, i32, i32) {
    %c0_i32 = arith.constant 0 : i32
    %c0_i32_0 = arith.constant 0 : i32
    return %arg0, %arg1, %c0_i32 : i32, i32, i32
  }
}

</mosaic_0001>

<llo_original>
// kernel: tpu_custom_call.1
$region0: #{tpu_custom_call.1}
  #allocation0 [shape = 'u32[]', space=smem, size = 0x4, offset = 0x4, fixed_abs, tag = 'smem constant byte address 0x4 - core index']
  #allocation1 [shape = 'u32[144,128]{1,0:T(1,128)}', space=vmem, size = 0x12000, scoped, tag = 'internal scratch']
  #allocation2 [shape = 'f32[128,128]{1,0:T(8,128)}', space=vmem, size = 0x10000, scoped, tag = 'scratch operand']
  #allocation3 [shape = 'bf16[128,128]{1,0:T(8,128)(2,1)}', space=vmem, size = 0x8000, scoped, tag = 'scratch operand']
  #allocation4 [shape = 'f32[1,128]{1,0:T(1,128)}', space=vmem, size = 0x200, scoped, tag = 'scratch operand']
  %s0 = inlined_call_operand.hbm [shape: f32[128,128], index: 0, kind: input, shape index: {}]
  %s1 = inlined_call_operand.hbm [shape: f32[128,128], index: 1, kind: input, shape index: {}]
  %s2 = inlined_call_operand.hbm [shape: bf16[2,128,128], index: 2, kind: input, shape index: {}]
  %s3 = inlined_call_operand.vmem [shape: f32[2,1,128], index: 3, kind: input, shape index: {}]
  %s4 = inlined_call_operand.vmem [shape: f32[2,1,128], index: 4, kind: input, shape index: {}]
  %s5 = inlined_call_operand.vmem [shape: f32[2,1,128], index: 5, kind: input, shape index: {}]
  %s6 = inlined_call_operand.hbm [shape: f32[2,128,128], index: 6, kind: output, shape index: {}]
  %s7 = sld [smem:[#allocation0]]
  $region77: #{tpu_custom_call.1} parent=0
    _
  %s9 = ssub.s32 1, %s7
  %s10 = scalar_select 0, %s9, %s7
  $region1: #{tpu_custom_call.1} parent=0
    #allocation5 [shape = 'u8[65536]{0}', space=vmem, size = 0x10000, scoped, tag = 'input window, operand 0, single buffered']
    #allocation6 [shape = 's32[2]{0}', space=sflag, size = 0x8, scoped, tag = 'scoped memory for tpu_custom_call.1']
    #allocation7 [shape = 's32[2]{0}', space=sflag, size = 0x8, scoped, tag = 'scoped memory for tpu_custom_call.1']
    #allocation8 [shape = 'u8[65536]{0}', space=vmem, size = 0x10000, scoped, tag = 'input window, operand 1, single buffered']
    #allocation9 [shape = 's32[1]{0}', space=sflag, size = 0x4, scoped, tag = 'scoped memory for tpu_custom_call.1']
    #allocation10 [shape = 'u8[65536]{0}', space=vmem, size = 0x10000, scoped, tag = 'input window, operand 2']
    #allocation11 [shape = 'u8[131072]{0}', space=vmem, size = 0x20000, scoped, tag = 'output window, operand 0']
    %11 = vsyncpa [#allocation6], 0
    %12 = vsyncpa [#allocation9], 0
    %13 = vsyncpa [#allocation7], 0
    %s14 = scalar_lea.sflag [#allocation7], 1
    %15 = vsyncpa %s14, 0
    loop: start=0, step=1, limit=4
    $region2: #{tpu_custom_call.1} parent=1 // loop_pre_header
      _
    $region3: #{tpu_custom_call.1} parent=1 // loop_header
      %s17 = sphi 0, %s21
      %p18 = scmp.ge.s32.totalorder %s17, 4
      %s24 = sphi 0, %s36
      %s25 = sphi 0, %s32
      %s26 = sphi 0, %s24
      %s27 = sphi 0, %s25
      %s28 = sphi 0, %s26
      %s29 = sphi 0, %s27
      %s39 = sphi 0, %s41
      %s42 = sphi 0, %s39
      %s43 = sphi 0, %s42
      %s59 = sphi 0, %s43
      %s63 = sphi 0, %s63
      %s65 = sphi 0, %s63
      %s66 = sphi 0, %s65
      %s80 = sphi 0, %s66
      %s86 = sphi 0, %s88
      %s89 = sphi 0, %s86
      %s90 = sphi 0, %s89
      %s106 = sphi 0, %s90
      %s112 = sphi 0, %s114
      %s115 = sphi 0, %s112
      %s116 = sphi 0, %s115
      %s132 = sphi 0, %s116
      %s138 = sphi 0, %s140
      %s141 = sphi 0, %s138
      %s142 = sphi 0, %s141
      %s158 = sphi 0, %s142
      %s164 = sphi 0, %s166
      %s167 = sphi 0, %s164
      %s168 = sphi 0, %s167
      %s184 = sphi 0, %s168
      %s192 = sphi 0, %s194
      %s195 = sphi 0, %s192
      %s196 = sphi 0, %s195
      %s212 = sphi 0, %s196
    $region4: #{tpu_custom_call.1} parent=1 // loop_header_branch
      %20 = sbr.rel (%p18) target = $region8
    $region5: #{tpu_custom_call.1} parent=1 // loop_body
      %s22 = ssub.s32 %s17, 1
      %s23 = ssub.s32 %s17, 2
      %s30 = sadd.s32 1, %s25
      %p31 = scmp.ge.s32.totalorder %s30, 1
      %s32 = scalar_select %p31, 0, %s30
      %s33 = sadd.s32 1, %s24
      %s34 = scalar_select %p31, %s33, %s24
      %p35 = scmp.ge.s32.totalorder %s34, 2
      %s36 = scalar_select %p35, 0, %s34
      %s37 = ssub.s32 %s25, %s32
      %p38 = scmp.eq.s32.totalorder %s37, 0
      %s40 = sadd.s32 %s39, 1
      %s41 = scalar_select %p38, %s39, %s40
      %p44 = pneg %p38
      %p45 = scmp.eq.s32.totalorder %s17, 1
      %p46 = por %p44, %p45
      %p47 = scmp.ne.s32.totalorder %s39, %s42
      %p48 = scmp.eq.s32.totalorder %s17, 0
      %p49 = por %p47, %p48
      %p50 = scmp.ne.s32.totalorder %s39, %s42
      %p51 = scmp.eq.s32.totalorder %s22, 1
      %p52 = por %p50, %p51
      %p53 = scmp.ne.s32.totalorder %s42, %s43
      %p54 = scmp.eq.s32.totalorder %s22, 0
      %p55 = por %p53, %p54
      %p56 = scmp.ne.s32.totalorder %s42, %s43
      %p57 = scmp.eq.s32.totalorder %s23, 1
      %p58 = por %p56, %p57
      %p60 = scmp.ne.s32.totalorder %s43, %s59
      %p61 = scmp.eq.s32.totalorder %s23, 0
      %p62 = por %p60, %p61
      %s64 = sadd.s32 %s63, 1
      %p67 = scmp.eq.s32.totalorder %s17, 1
      %p68 = scmp.ne.s32.totalorder %s63, %s65
      %p69 = scmp.eq.s32.totalorder %s17, 0
      %p70 = por %p68, %p69
      %p71 = scmp.ne.s32.totalorder %s63, %s65
      %p72 = scmp.eq.s32.totalorder %s22, 1
      %p73 = por %p71, %p72
      %p74 = scmp.ne.s32.totalorder %s65, %s66
      %p75 = scmp.eq.s32.totalorder %s22, 0
      %p76 = por %p74, %p75
      %p77 = scmp.ne.s32.totalorder %s65, %s66
      %p78 = scmp.eq.s32.totalorder %s23, 1
      %p79 = por %p77, %p78
      %p81 = scmp.ne.s32.totalorder %s66, %s80
      %p82 = scmp.eq.s32.totalorder %s23, 0
      %p83 = por %p81, %p82
      %s84 = ssub.s32 %s24, %s36
      %p85 = scmp.eq.s32.totalorder %s84, 0
      %s87 = sadd.s32 %s86, 1
      %s88 = scalar_select %p85, %s86, %s87
      %p91 = pneg %p85
      %p92 = scmp.eq.s32.totalorder %s17, 1
      %p93 = por %p91, %p92
      %p94 = scmp.ne.s32.totalorder %s86, %s89
      %p95 = scmp.eq.s32.totalorder %s17, 0
      %p96 = por %p94, %p95
      %p97 = scmp.ne.s32.totalorder %s86, %s89
      %p98 = scmp.eq.s32.totalorder %s22, 1
      %p99 = por %p97, %p98
      %p100 = scmp.ne.s32.totalorder %s89, %s90
      %p101 = scmp.eq.s32.totalorder %s22, 0
      %p102 = por %p100, %p101
      %p103 = scmp.ne.s32.totalorder %s89, %s90
      %p104 = scmp.eq.s32.totalorder %s23, 1
      %p105 = por %p103, %p104
      %p107 = scmp.ne.s32.totalorder %s90, %s106
      %p108 = scmp.eq.s32.totalorder %s23, 0
      %p109 = por %p107, %p108
      %s110 = ssub.s32 %s24, %s36
      %p111 = scmp.eq.s32.totalorder %s110, 0
      %s113 = sadd.s32 %s112, 1
      %s114 = scalar_select %p111, %s112, %s113
      %p117 = pneg %p111
      %p118 = scmp.eq.s32.totalorder %s17, 1
      %p119 = por %p117, %p118
      %p120 = scmp.ne.s32.totalorder %s112, %s115
      %p121 = scmp.eq.s32.totalorder %s17, 0
      %p122 = por %p120, %p121
      %p123 = scmp.ne.s32.totalorder %s112, %s115
      %p124 = scmp.eq.s32.totalorder %s22, 1
      %p125 = por %p123, %p124
      %p126 = scmp.ne.s32.totalorder %s115, %s116
      %p127 = scmp.eq.s32.totalorder %s22, 0
      %p128 = por %p126, %p127
      %p129 = scmp.ne.s32.totalorder %s115, %s116
      %p130 = scmp.eq.s32.totalorder %s23, 1
      %p131 = por %p129, %p130
      %p133 = scmp.ne.s32.totalorder %s116, %s132
      %p134 = scmp.eq.s32.totalorder %s23, 0
      %p135 = por %p133, %p134
      %s136 = ssub.s32 %s24, %s36
      %p137 = scmp.eq.s32.totalorder %s136, 0
      %s139 = sadd.s32 %s138, 1
      %s140 = scalar_select %p137, %s138, %s139
      %p143 = pneg %p137
      %p144 = scmp.eq.s32.totalorder %s17, 1
      %p145 = por %p143, %p144
      %p146 = scmp.ne.s32.totalorder %s138, %s141
      %p147 = scmp.eq.s32.totalorder %s17, 0
      %p148 = por %p146, %p147
      %p149 = scmp.ne.s32.totalorder %s138, %s141
      %p150 = scmp.eq.s32.totalorder %s22, 1
      %p151 = por %p149, %p150
      %p152 = scmp.ne.s32.totalorder %s141, %s142
      %p153 = scmp.eq.s32.totalorder %s22, 0
      %p154 = por %p152, %p153
      %p155 = scmp.ne.s32.totalorder %s141, %s142
      %p156 = scmp.eq.s32.totalorder %s23, 1
      %p157 = por %p155, %p156
      %p159 = scmp.ne.s32.totalorder %s142, %s158
      %p160 = scmp.eq.s32.totalorder %s23, 0
      %p161 = por %p159, %p160
      %s162 = ssub.s32 %s24, %s36
      %p163 = scmp.eq.s32.totalorder %s162, 0
      %s165 = sadd.s32 %s164, 1
      %s166 = scalar_select %p163, %s164, %s165
      %p169 = pneg %p163
      %p170 = scmp.eq.s32.totalorder %s17, 1
      %p171 = por %p169, %p170
      %p172 = scmp.ne.s32.totalorder %s164, %s167
      %p173 = scmp.eq.s32.totalorder %s17, 0
      %p174 = por %p172, %p173
      %p175 = scmp.ne.s32.totalorder %s164, %s167
      %p176 = scmp.eq.s32.totalorder %s22, 1
      %p177 = por %p175, %p176
      %p178 = scmp.ne.s32.totalorder %s167, %s168
      %p179 = scmp.eq.s32.totalorder %s22, 0
      %p180 = por %p178, %p179
      %p181 = scmp.ne.s32.totalorder %s167, %s168
      %p182 = scmp.eq.s32.totalorder %s23, 1
      %p183 = por %p181, %p182
      %p185 = scmp.ne.s32.totalorder %s168, %s184
      %p186 = scmp.eq.s32.totalorder %s23, 0
      %p187 = por %p185, %p186
      %s188 = ssub.s32 %s24, %s36
      %s189 = ssub.s32 %s25, %s32
      %s190 = sor.u32 %s188, %s189
      %p191 = scmp.eq.s32.totalorder %s190, 0
      %s193 = sadd.s32 %s192, 1
      %s194 = scalar_select %p191, %s192, %s193
      %p197 = pneg %p191
      %p198 = scmp.eq.s32.totalorder %s17, 1
      %p199 = por %p197, %p198
      %p200 = scmp.ne.s32.totalorder %s192, %s195
      %p201 = scmp.eq.s32.totalorder %s17, 0
      %p202 = por %p200, %p201
      %p203 = scmp.ne.s32.totalorder %s192, %s195
      %p204 = scmp.eq.s32.totalorder %s22, 1
      %p205 = por %p203, %p204
      %p206 = scmp.ne.s32.totalorder %s195, %s196
      %p207 = scmp.eq.s32.totalorder %s22, 0
      %p208 = por %p206, %p207
      %p209 = scmp.ne.s32.totalorder %s195, %s196
      %p210 = scmp.eq.s32.totalorder %s23, 1
      %p211 = por %p209, %p210
      %p213 = scmp.ne.s32.totalorder %s196, %s212
      %p214 = scmp.eq.s32.totalorder %s23, 0
      %p215 = por %p213, %p214
      %p216 = scmp.le.s32.totalorder 1, %s17
      %p217 = scmp.lt.s32.totalorder %s17, 3
      %p218 = pnand %p216, %p217
      %p219 = pneg %p218
      // Predicated region
      $region9: #{tpu_custom_call.1} parent=5 // pred_check
        _
      $region10: #{tpu_custom_call.1} parent=5 // pred_check_branch
        %221 = sbr.rel (%p218) target = $region12
      $region11: #{tpu_custom_call.1} parent=5 // pred_region
        %s222 = ssub.s32 %s17, 1
        // Predicated region
        $region13: #{tpu_custom_call.1} parent=11 // pred_check
          %p223 = pneg %p55
        $region14: #{tpu_custom_call.1} parent=11 // pred_check_branch
          %225 = sbr.rel (%p223) target = $region16
        $region15: #{tpu_custom_call.1} parent=11 // pred_region
          %s226 = smul.u32 16, %s27
          %s228 = ssub.s32 2048, 2048
          %229 = vsyncadd [#allocation6], %s228
          %s230 = smul.addr %s226, 128
          %s231 = scalar_lea.hbm %s0, %s230
          %s232 = sshll.u32 [#allocation5], 4
          %s233 = int_to_ptr.vmem [resolvable:$true] %s232
          %238 = dma.hbm_to_vmem [thread:$0]  %s231, 2048, %s233, [#allocation6], 128, 128, 8
        $region16: #{tpu_custom_call.1} parent=11 // pred_fallthru
          _
        // Predicated region
        $region17: #{tpu_custom_call.1} parent=11 // pred_check
          %p239 = pneg %p76
        $region18: #{tpu_custom_call.1} parent=11 // pred_check_branch
          %241 = sbr.rel (%p239) target = $region20
        $region19: #{tpu_custom_call.1} parent=11 // pred_region
          %s243 = ssub.s32 2048, 2048
          %244 = vsyncadd [#allocation9], %s243
          %s245 = sshll.u32 [#allocation8], 4
          %s246 = int_to_ptr.vmem [resolvable:$true] %s245
          %251 = dma.hbm_to_vmem [thread:$0]  %s1, 2048, %s246, [#allocation9], 128, 128, 8
        $region20: #{tpu_custom_call.1} parent=11 // pred_fallthru
          _
      $region12: #{tpu_custom_call.1} parent=5 // pred_fallthru
        _
      %p252 = scmp.lt.s32.totalorder %s17, 2
      // Predicated region
      $region21: #{tpu_custom_call.1} parent=5 // pred_check
        %p253 = pneg %p252
      $region22: #{tpu_custom_call.1} parent=5 // pred_check_branch
        %255 = sbr.rel (%p253) target = $region24
      $region23: #{tpu_custom_call.1} parent=5 // pred_region
        // Predicated region
        $region25: #{tpu_custom_call.1} parent=23 // pred_check
          %p256 = pneg %p96
        $region26: #{tpu_custom_call.1} parent=23 // pred_check_branch
          %258 = sbr.rel (%p256) target = $region28
        $region27: #{tpu_custom_call.1} parent=23 // pred_region
          %s259 = sand.u32 %s17, 1
          %s260 = scalar_lea.sflag [#allocation6], %s259
          %s261 = sand.u32 %s86, 1
          %s262 = smul.addr %s261, 64
          %s263 = scalar_lea.vmem [#allocation10], %s262
          %s265 = ssub.s32 1024, 1024
          %266 = vsyncadd %s260, %s265
          %s267 = smul.addr %s24, 16
          %s268 = smul.addr %s267, 64
          %s269 = scalar_lea.hbm %s2, %s268
          %s270 = sshll.u32 %s263, 4
          %s271 = int_to_ptr.vmem [resolvable:$true] %s270
          %276 = dma.hbm_to_vmem [thread:$0]  %s269, 1024, %s271, %s260, 64, 64, 4
        $region28: #{tpu_custom_call.1} parent=23 // pred_fallthru
          _
        // Predicated region
        $region29: #{tpu_custom_call.1} parent=23 // pred_check
          %p277 = pneg %p122
        $region30: #{tpu_custom_call.1} parent=23 // pred_check_branch
          %279 = sbr.rel (%p277) target = $region32
        $region31: #{tpu_custom_call.1} parent=23 // pred_region
          %p280 = scmp.lt.s32.totalorder %s24, 1
          %s281 = scalar_select %p280, %s24, 1
          %s282 = scalar_lea.vmem %s3, %s281
        $region32: #{tpu_custom_call.1} parent=23 // pred_fallthru
          _
        // Predicated region
        $region33: #{tpu_custom_call.1} parent=23 // pred_check
          %p283 = pneg %p148
        $region34: #{tpu_custom_call.1} parent=23 // pred_check_branch
          %285 = sbr.rel (%p283) target = $region36
        $region35: #{tpu_custom_call.1} parent=23 // pred_region
          %p286 = scmp.lt.s32.totalorder %s24, 1
          %s287 = scalar_select %p286, %s24, 1
          %s288 = scalar_lea.vmem %s4, %s287
        $region36: #{tpu_custom_call.1} parent=23 // pred_fallthru
          _
        // Predicated region
        $region37: #{tpu_custom_call.1} parent=23 // pred_check
          %p289 = pneg %p174
        $region38: #{tpu_custom_call.1} parent=23 // pred_check_branch
          %291 = sbr.rel (%p289) target = $region40
        $region39: #{tpu_custom_call.1} parent=23 // pred_region
          %p292 = scmp.lt.s32.totalorder %s24, 1
          %s293 = scalar_select %p292, %s24, 1
          %s294 = scalar_lea.vmem %s5, %s293
        $region40: #{tpu_custom_call.1} parent=23 // pred_fallthru
          _
      $region24: #{tpu_custom_call.1} parent=5 // pred_fallthru
        _
      %p295 = scmp.le.s32.totalorder 1, %s17
      %p296 = scmp.lt.s32.totalorder %s17, 3
      %p297 = pnand %p295, %p296
      %p298 = pneg %p297
      // Predicated region
      $region41: #{tpu_custom_call.1} parent=5 // pred_check
        _
      $region42: #{tpu_custom_call.1} parent=5 // pred_check_branch
        %300 = sbr.rel (%p297) target = $region44
      $region43: #{tpu_custom_call.1} parent=5 // pred_region
        %s301 = ssub.s32 %s17, 1
        // Predicated region
        $region45: #{tpu_custom_call.1} parent=43 // pred_check
          %p302 = pneg %p55
        $region46: #{tpu_custom_call.1} parent=43 // pred_check_branch
          %304 = sbr.rel (%p302) target = $region48
        $region47: #{tpu_custom_call.1} parent=43 // pred_region
          %305 = dma.done [#allocation6], 2048
        $region48: #{tpu_custom_call.1} parent=43 // pred_fallthru
          _
        // Predicated region
        $region49: #{tpu_custom_call.1} parent=43 // pred_check
          %p306 = pneg %p76
        $region50: #{tpu_custom_call.1} parent=43 // pred_check_branch
          %308 = sbr.rel (%p306) target = $region52
        $region51: #{tpu_custom_call.1} parent=43 // pred_region
          %309 = dma.done [#allocation9], 2048
        $region52: #{tpu_custom_call.1} parent=43 // pred_fallthru
          _
        %s310 = sand.u32 %s22, 1
        %s311 = scalar_lea.sflag [#allocation6], %s310
        %s312 = sand.u32 %s89, 1
        %s313 = smul.addr %s312, 64
        %s314 = scalar_lea.vmem [#allocation10], %s313
        // Predicated region
        $region53: #{tpu_custom_call.1} parent=43 // pred_check
          %p315 = pneg %p102
        $region54: #{tpu_custom_call.1} parent=43 // pred_check_branch
          %317 = sbr.rel (%p315) target = $region56
        $region55: #{tpu_custom_call.1} parent=43 // pred_region
          %318 = dma.done %s311, 1024
        $region56: #{tpu_custom_call.1} parent=43 // pred_fallthru
          _
        %p319 = pneg %p55
        %p320 = pneg %p52
        %p321 = pneg %p76
        %p322 = pneg %p73
        %s323 = sand.u32 %s22, 1
        %s324 = scalar_lea.sflag [#allocation6], %s323
        %s325 = sand.u32 %s89, 1
        %s326 = smul.addr %s325, 64
        %s327 = scalar_lea.vmem [#allocation10], %s326
        %p328 = pneg %p102
        %p329 = pneg %p99
        %p330 = scmp.lt.s32.totalorder %s26, 1
        %s331 = scalar_select %p330, %s26, 1
        %s332 = scalar_lea.vmem %s3, %s331
        %p333 = pneg %p128
        %p334 = pneg %p125
        %p335 = scmp.lt.s32.totalorder %s26, 1
        %s336 = scalar_select %p335, %s26, 1
        %s337 = scalar_lea.vmem %s4, %s336
        %p338 = pneg %p154
        %p339 = pneg %p151
        %p340 = scmp.lt.s32.totalorder %s26, 1
        %s341 = scalar_select %p340, %s26, 1
        %s342 = scalar_lea.vmem %s5, %s341
        %p343 = pneg %p180
        %p344 = pneg %p177
        %p345 = pneg %p208
        %p346 = pneg %p205
        %s347 = sand.u32 %s195, 1
        %s348 = scalar_lea.sflag [#allocation7], %s347
        %s349 = sand.u32 %s195, 1
        %s350 = smul.addr %s349, 128
        %s351 = scalar_lea.vmem [#allocation11], %s350
        %s352 = smul.u32 16, %s27
        %p353 = scmp.lt.s32.totalorder %s26, 1
        %s354 = scalar_select %p353, %s26, 1
        %s355 = scalar_lea.vmem %s3, %s354
        %p356 = scmp.lt.s32.totalorder %s26, 1
        %s357 = scalar_select %p356, %s26, 1
        %s358 = scalar_lea.vmem %s4, %s357
        %p359 = scmp.lt.s32.totalorder %s26, 1
        %s360 = scalar_select %p359, %s26, 1
        %s361 = scalar_lea.vmem %s5, %s360
        %s362 = smul.u32 16, %s27
        %p364 = scmp.eq.s32.totalorder %s26, 0
        %p365 = scmp.eq.s32.totalorder %s27, 0
        %p366 = pnand %p364, %p365
        %p367 = pneg %p366
        // Predicated region
        $region57: #{tpu_custom_call.1} parent=43 // pred_check
          _
        $region58: #{tpu_custom_call.1} parent=43 // pred_check_branch
          %369 = sbr.rel (%p366) target = $region60
        $region59: #{tpu_custom_call.1} parent=43 // pred_region
          %v370 = vld [vmem:[#allocation8] sm:$0xff]
          %v371 = vld [vmem:[#allocation8 + $0x8] sm:$0xff]
          %v372 = vld [vmem:[#allocation8 + $0x10] sm:$0xff]
          %v373 = vld [vmem:[#allocation8 + $0x18] sm:$0xff]
          %v374 = vld [vmem:[#allocation8 + $0x20] sm:$0xff]
          %v375 = vld [vmem:[#allocation8 + $0x28] sm:$0xff]
          %v376 = vld [vmem:[#allocation8 + $0x30] sm:$0xff]
          %v377 = vld [vmem:[#allocation8 + $0x38] sm:$0xff]
          %v378 = vld [vmem:[#allocation8 + $0x40] sm:$0xff]
          %v379 = vld [vmem:[#allocation8 + $0x48] sm:$0xff]
          %v380 = vld [vmem:[#allocation8 + $0x50] sm:$0xff]
          %v381 = vld [vmem:[#allocation8 + $0x58] sm:$0xff]
          %v382 = vld [vmem:[#allocation8 + $0x60] sm:$0xff]
          %v383 = vld [vmem:[#allocation8 + $0x68] sm:$0xff]
          %v384 = vld [vmem:[#allocation8 + $0x70] sm:$0xff]
          %v385 = vld [vmem:[#allocation8 + $0x78] sm:$0xff]
          %386 = vst [vmem:[#allocation2] sm:$0xff] %v370
          %387 = vst [vmem:[#allocation2 + $0x8] sm:$0xff] %v371
          %388 = vst [vmem:[#allocation2 + $0x10] sm:$0xff] %v372
          %389 = vst [vmem:[#allocation2 + $0x18] sm:$0xff] %v373
          %390 = vst [vmem:[#allocation2 + $0x20] sm:$0xff] %v374
          %391 = vst [vmem:[#allocation2 + $0x28] sm:$0xff] %v375
          %392 = vst [vmem:[#allocation2 + $0x30] sm:$0xff] %v376
          %393 = vst [vmem:[#allocation2 + $0x38] sm:$0xff] %v377
          %394 = vst [vmem:[#allocation2 + $0x40] sm:$0xff] %v378
          %395 = vst [vmem:[#allocation2 + $0x48] sm:$0xff] %v379
          %396 = vst [vmem:[#allocation2 + $0x50] sm:$0xff] %v380
          %397 = vst [vmem:[#allocation2 + $0x58] sm:$0xff] %v381
          %398 = vst [vmem:[#allocation2 + $0x60] sm:$0xff] %v382
          %399 = vst [vmem:[#allocation2 + $0x68] sm:$0xff] %v383
          %400 = vst [vmem:[#allocation2 + $0x70] sm:$0xff] %v384
          %401 = vst [vmem:[#allocation2 + $0x78] sm:$0xff] %v385
        $region60: #{tpu_custom_call.1} parent=43 // pred_fallthru
          _
        // Predicated region
        $region61: #{tpu_custom_call.1} parent=43 // pred_check
          %p402 = pneg %p365
        $region62: #{tpu_custom_call.1} parent=43 // pred_check_branch
          %404 = sbr.rel (%p402) target = $region64
        $region63: #{tpu_custom_call.1} parent=43 // pred_region
          %v405 = vld [vmem:[#allocation2] sm:$0xff]
          %v406 = vld [vmem:[#allocation2 + $0x8] sm:$0xff]
          %v407 = vld [vmem:[#allocation2 + $0x10] sm:$0xff]
          %v408 = vld [vmem:[#allocation2 + $0x18] sm:$0xff]
          %v409 = vld [vmem:[#allocation2 + $0x20] sm:$0xff]
          %v410 = vld [vmem:[#allocation2 + $0x28] sm:$0xff]
          %v411 = vld [vmem:[#allocation2 + $0x30] sm:$0xff]
          %v412 = vld [vmem:[#allocation2 + $0x38] sm:$0xff]
          %v413 = vld [vmem:[#allocation2 + $0x40] sm:$0xff]
          %v414 = vld [vmem:[#allocation2 + $0x48] sm:$0xff]
          %v415 = vld [vmem:[#allocation2 + $0x50] sm:$0xff]
          %v416 = vld [vmem:[#allocation2 + $0x58] sm:$0xff]
          %v417 = vld [vmem:[#allocation2 + $0x60] sm:$0xff]
          %v418 = vld [vmem:[#allocation2 + $0x68] sm:$0xff]
          %v419 = vld [vmem:[#allocation2 + $0x70] sm:$0xff]
          %v420 = vld [vmem:[#allocation2 + $0x78] sm:$0xff]
          %v421 = vpack.c.bf16 %v406, %v405
          %v422 = vpack.c.bf16 %v408, %v407
          %v423 = vpack.c.bf16 %v410, %v409
          %v424 = vpack.c.bf16 %v412, %v411
          %v425 = vpack.c.bf16 %v414, %v413
          %v426 = vpack.c.bf16 %v416, %v415
          %v427 = vpack.c.bf16 %v418, %v417
          %v428 = vpack.c.bf16 %v420, %v419
          %v429 = vld [vmem:[%s314] sm:$0xf]
          %v430 = vld [vmem:[%s314 + $0x4] sm:$0xf]
          %v431 = vld [vmem:[%s314 + $0x8] sm:$0xf]
          %v432 = vld [vmem:[%s314 + $0xc] sm:$0xf]
          %v433 = vld [vmem:[%s314 + $0x10] sm:$0xf]
          %v434 = vld [vmem:[%s314 + $0x14] sm:$0xf]
          %v435 = vld [vmem:[%s314 + $0x18] sm:$0xf]
          %v436 = vld [vmem:[%s314 + $0x1c] sm:$0xf]
          %v437 = vld [vmem:[%s314 + $0x20] sm:$0xf]
          %v438 = vld [vmem:[%s314 + $0x24] sm:$0xf]
          %v439 = vld [vmem:[%s314 + $0x28] sm:$0xf]
          %v440 = vld [vmem:[%s314 + $0x2c] sm:$0xf]
          %v441 = vld [vmem:[%s314 + $0x30] sm:$0xf]
          %v442 = vld [vmem:[%s314 + $0x34] sm:$0xf]
          %v443 = vld [vmem:[%s314 + $0x38] sm:$0xf]
          %v444 = vld [vmem:[%s314 + $0x3c] sm:$0xf]
          %v461 = vunpack.c.l.b16 %v429
          %v462 = vunpack.c.l.b16 %v430
          %v463 = vunpack.c.l.b16 %v431
          %v464 = vunpack.c.l.b16 %v432
          %v465 = vunpack.c.l.b16 %v433
          %v466 = vunpack.c.l.b16 %v434
          %v467 = vunpack.c.l.b16 %v435
          %v468 = vunpack.c.l.b16 %v436
          %v469 = vunpack.c.l.b16 %v437
          %v470 = vunpack.c.l.b16 %v438
          %v471 = vunpack.c.l.b16 %v439
          %v472 = vunpack.c.l.b16 %v440
          %v473 = vunpack.c.l.b16 %v441
          %v474 = vunpack.c.l.b16 %v442
          %v475 = vunpack.c.l.b16 %v443
          %v476 = vunpack.c.l.b16 %v444
          %v477 = vpack.c.b16 %v462, %v461
          %v478 = vpack.c.b16 %v464, %v463
          %v479 = vpack.c.b16 %v466, %v465
          %v480 = vpack.c.b16 %v468, %v467
          %v481 = vpack.c.b16 %v470, %v469
          %v482 = vpack.c.b16 %v472, %v471
          %v483 = vpack.c.b16 %v474, %v473
          %v484 = vpack.c.b16 %v476, %v475
          %493 = vmatprep.subr.bf16.mxu0 0
          %494 = vmatpush1.bf16.msra.mxu0 %v484
          %495 = vmatprep.subr.bf16.mxu0 0
          %496 = vmatpush1.bf16.msra.mxu0 %v483
          %497 = vmatprep.subr.bf16.mxu0 0
          %498 = vmatpush1.bf16.msra.mxu0 %v482
          %499 = vmatprep.subr.bf16.mxu0 0
          %500 = vmatpush1.bf16.msra.mxu0 %v481
          %501 = vmatprep.subr.bf16.mxu0 0
          %502 = vmatpush1.bf16.msra.mxu0 %v480
          %503 = vmatprep.subr.bf16.mxu0 0
          %504 = vmatpush1.bf16.msra.mxu0 %v479
          %505 = vmatprep.subr.bf16.mxu0 0
          %506 = vmatpush1.bf16.msra.mxu0 %v478
          %507 = vmatprep.subr.bf16.mxu0 0
          %508 = vmatpush1.bf16.msra.mxu0 %v477
          %509 = vmatprep.subr.bf16.mxu0 0
          %510 = vmatpush2.bf16.msra.mxu0 0
          %511 = vmatprep.subr.bf16.mxu0 0
          %512 = vmatpush2.bf16.msra.mxu0 0
          %513 = vmatprep.subr.bf16.mxu0 0
          %514 = vmatpush2.bf16.msra.mxu0 0
          %515 = vmatprep.subr.bf16.mxu0 0
          %516 = vmatpush2.bf16.msra.mxu0 0
          %517 = vmatprep.subr.bf16.mxu0 0
          %518 = vmatpush2.bf16.msra.mxu0 0
          %519 = vmatprep.subr.bf16.mxu0 0
          %520 = vmatpush2.bf16.msra.mxu0 0
          %521 = vmatprep.subr.bf16.mxu0 0
          %522 = vmatpush2.bf16.msra.mxu0 0
          %523 = vmatprep.subr.bf16.mxu0 0
          %524 = vmatpush2.bf16.msra.mxu0 0
          %525 = vmatprep.mubr.bf16.mxu0 0
          %526 = vmatmul.mubr.bf16.gmra.mxu0 %v421
          %v527 = vpop.f32.mrf.mxu0
          %v528 = vadd.f32 0.0, %v527
          %v529 = vpop.f32.mrf.mxu0
          %v530 = vpop.f32.mrf.mxu0
          %v531 = vadd.f32 0.0, %v530
          %v532 = vpop.f32.mrf.mxu0
          %533 = vmatprep.mubr.bf16.mxu0 0
          %534 = vmatmul.mubr.bf16.gmra.mxu0 %v422
          %v535 = vpop.f32.mrf.mxu0
          %v536 = vadd.f32 0.0, %v535
          %v537 = vpop.f32.mrf.mxu0
          %v538 = vpop.f32.mrf.mxu0
          %v539 = vadd.f32 0.0, %v538
          %v540 = vpop.f32.mrf.mxu0
          %541 = vmatprep.mubr.bf16.mxu0 0
          %542 = vmatmul.mubr.bf16.gmra.mxu0 %v423
          %v543 = vpop.f32.mrf.mxu0
          %v544 = vadd.f32 0.0, %v543
          %v545 = vpop.f32.mrf.mxu0
          %v546 = vpop.f32.mrf.mxu0
          %v547 = vadd.f32 0.0, %v546
          %v548 = vpop.f32.mrf.mxu0
          %549 = vmatprep.mubr.bf16.mxu0 0
          %550 = vmatmul.mubr.bf16.gmra.mxu0 %v424
          %v551 = vpop.f32.mrf.mxu0
          %v552 = vadd.f32 0.0, %v551
          %v553 = vpop.f32.mrf.mxu0
          %v554 = vpop.f32.mrf.mxu0
          %v555 = vadd.f32 0.0, %v554
          %v556 = vpop.f32.mrf.mxu0
          %557 = vmatprep.mubr.bf16.mxu0 0
          %558 = vmatmul.mubr.bf16.gmra.mxu0 %v425
          %v559 = vpop.f32.mrf.mxu0
          %v560 = vadd.f32 0.0, %v559
          %v561 = vpop.f32.mrf.mxu0
          %v562 = vpop.f32.mrf.mxu0
          %v563 = vadd.f32 0.0, %v562
          %v564 = vpop.f32.mrf.mxu0
          %565 = vmatprep.mubr.bf16.mxu0 0
          %566 = vmatmul.mubr.bf16.gmra.mxu0 %v426
          %v567 = vpop.f32.mrf.mxu0
          %v568 = vadd.f32 0.0, %v567
          %v569 = vpop.f32.mrf.mxu0
          %v570 = vpop.f32.mrf.mxu0
          %v571 = vadd.f32 0.0, %v570
          %v572 = vpop.f32.mrf.mxu0
          %573 = vmatprep.mubr.bf16.mxu0 0
          %574 = vmatmul.mubr.bf16.gmra.mxu0 %v427
          %v575 = vpop.f32.mrf.mxu0
          %v576 = vadd.f32 0.0, %v575
          %v577 = vpop.f32.mrf.mxu0
          %v578 = vpop.f32.mrf.mxu0
          %v579 = vadd.f32 0.0, %v578
          %v580 = vpop.f32.mrf.mxu0
          %581 = vmatprep.mubr.bf16.mxu0 0
          %582 = vmatmul.mubr.bf16.gmra.mxu0 %v428
          %v583 = vpop.f32.mrf.mxu0
          %v584 = vadd.f32 0.0, %v583
          %v585 = vpop.f32.mrf.mxu0
          %v586 = vpop.f32.mrf.mxu0
          %v587 = vadd.f32 0.0, %v586
          %v588 = vpop.f32.mrf.mxu0
          %589 = vdwg.mxu0
          %v590 = vpack.c.bf16 %v531, %v528
          %v591 = vpack.c.bf16 %v539, %v536
          %v592 = vpack.c.bf16 %v547, %v544
          %v593 = vpack.c.bf16 %v555, %v552
          %v594 = vpack.c.bf16 %v563, %v560
          %v595 = vpack.c.bf16 %v571, %v568
          %v596 = vpack.c.bf16 %v579, %v576
          %v597 = vpack.c.bf16 %v587, %v584
          %v606 = vunpack.c.l.b16 %v590
          %v607 = vunpack.c.h.b16 %v590
          %v608 = vunpack.c.l.b16 %v591
          %v609 = vunpack.c.h.b16 %v591
          %v610 = vunpack.c.l.b16 %v592
          %v611 = vunpack.c.h.b16 %v592
          %v612 = vunpack.c.l.b16 %v593
          %v613 = vunpack.c.h.b16 %v593
          %v614 = vunpack.c.l.b16 %v594
          %v615 = vunpack.c.h.b16 %v594
          %v616 = vunpack.c.l.b16 %v595
          %v617 = vunpack.c.h.b16 %v595
          %v618 = vunpack.c.l.b16 %v596
          %v619 = vunpack.c.h.b16 %v596
          %v620 = vunpack.c.l.b16 %v597
          %v621 = vunpack.c.h.b16 %v597
          %v622 = vpack.c.b16 %v606, %v606
          %v623 = vpack.c.b16 %v607, %v607
          %v624 = vpack.c.b16 %v608, %v608
          %v625 = vpack.c.b16 %v609, %v609
          %v626 = vpack.c.b16 %v610, %v610
          %v627 = vpack.c.b16 %v611, %v611
          %v628 = vpack.c.b16 %v612, %v612
          %v629 = vpack.c.b16 %v613, %v613
          %v630 = vpack.c.b16 %v614, %v614
          %v631 = vpack.c.b16 %v615, %v615
          %v632 = vpack.c.b16 %v616, %v616
          %v633 = vpack.c.b16 %v617, %v617
          %v634 = vpack.c.b16 %v618, %v618
          %v635 = vpack.c.b16 %v619, %v619
          %v636 = vpack.c.b16 %v620, %v620
          %v637 = vpack.c.b16 %v621, %v621
          %654 = vst [vmem:[#allocation3] sm:$0xf] %v622
          %655 = vst [vmem:[#allocation3 + $0x4] sm:$0xf] %v623
          %656 = vst [vmem:[#allocation3 + $0x8] sm:$0xf] %v624
          %657 = vst [vmem:[#allocation3 + $0xc] sm:$0xf] %v625
          %658 = vst [vmem:[#allocation3 + $0x10] sm:$0xf] %v626
          %659 = vst [vmem:[#allocation3 + $0x14] sm:$0xf] %v627
          %660 = vst [vmem:[#allocation3 + $0x18] sm:$0xf] %v628
          %661 = vst [vmem:[#allocation3 + $0x1c] sm:$0xf] %v629
          %662 = vst [vmem:[#allocation3 + $0x20] sm:$0xf] %v630
          %663 = vst [vmem:[#allocation3 + $0x24] sm:$0xf] %v631
          %664 = vst [vmem:[#allocation3 + $0x28] sm:$0xf] %v632
          %665 = vst [vmem:[#allocation3 + $0x2c] sm:$0xf] %v633
          %666 = vst [vmem:[#allocation3 + $0x30] sm:$0xf] %v634
          %667 = vst [vmem:[#allocation3 + $0x34] sm:$0xf] %v635
          %668 = vst [vmem:[#allocation3 + $0x38] sm:$0xf] %v636
          %669 = vst [vmem:[#allocation3 + $0x3c] sm:$0xf] %v637
          %v670 = vld [vmem:[%s355] sm:$0x1]
          %671 = vmatprep.subr.mxu0 0.0
          %672 = vmatpush1.xpose.msra.mxu0 %v587
          %673 = vmatprep.subr.mxu0 0.0
          %674 = vmatpush1.xpose.msra.mxu0 %v584
          %675 = vmatprep.subr.mxu0 0.0
          %676 = vmatpush1.xpose.msra.mxu0 %v579
          %677 = vmatprep.subr.mxu0 0.0
          %678 = vmatpush1.xpose.msra.mxu0 %v576
          %679 = vmatprep.subr.mxu0 0.0
          %680 = vmatpush1.xpose.msra.mxu0 %v571
          %681 = vmatprep.subr.mxu0 0.0
          %682 = vmatpush1.xpose.msra.mxu0 %v568
          %683 = vmatprep.subr.mxu0 0.0
          %684 = vmatpush1.xpose.msra.mxu0 %v563
          %685 = vmatprep.subr.mxu0 0.0
          %686 = vmatpush1.xpose.msra.mxu0 %v560
          %687 = vmatprep.subr.mxu0 0.0
          %688 = vmatpush1.xpose.msra.mxu0 %v555
          %689 = vmatprep.subr.mxu0 0.0
          %690 = vmatpush1.xpose.msra.mxu0 %v552
          %691 = vmatprep.subr.mxu0 0.0
          %692 = vmatpush1.xpose.msra.mxu0 %v547
          %693 = vmatprep.subr.mxu0 0.0
          %694 = vmatpush1.xpose.msra.mxu0 %v544
          %695 = vmatprep.subr.mxu0 0.0
          %696 = vmatpush1.xpose.msra.mxu0 %v539
          %697 = vmatprep.subr.mxu0 0.0
          %698 = vmatpush1.xpose.msra.mxu0 %v536
          %699 = vmatprep.subr.mxu0 0.0
          %700 = vmatpush1.xpose.msra.mxu0 %v531
          %701 = vmatprep.subr.mxu0 0.0
          %702 = vmatpush1.xpose.msra.mxu0 %v528
          %703 = vmatprep.subr.mxu0 0.0
          %704 = vmatpush2.xpose.msra.mxu0 0.0
          %705 = vmatprep.subr.mxu0 0.0
          %706 = vmatpush2.xpose.msra.mxu0 0.0
          %707 = vmatprep.subr.mxu0 0.0
          %708 = vmatpush2.xpose.msra.mxu0 0.0
          %709 = vmatprep.subr.mxu0 0.0
          %710 = vmatpush2.xpose.msra.mxu0 0.0
          %711 = vmatprep.subr.mxu0 0.0
          %712 = vmatpush2.xpose.msra.mxu0 0.0
          %713 = vmatprep.subr.mxu0 0.0
          %714 = vmatpush2.xpose.msra.mxu0 0.0
          %715 = vmatprep.subr.mxu0 0.0
          %716 = vmatpush2.xpose.msra.mxu0 0.0
          %717 = vmatprep.subr.mxu0 0.0
          %718 = vmatpush2.xpose.msra.mxu0 0.0
          %719 = vmatprep.subr.mxu0 0.0
          %720 = vmatpush2.xpose.msra.mxu0 0.0
          %721 = vmatprep.subr.mxu0 0.0
          %722 = vmatpush2.xpose.msra.mxu0 0.0
          %723 = vmatprep.subr.mxu0 0.0
          %724 = vmatpush2.xpose.msra.mxu0 0.0
          %725 = vmatprep.subr.mxu0 0.0
          %726 = vmatpush2.xpose.msra.mxu0 0.0
          %727 = vmatprep.subr.mxu0 0.0
          %728 = vmatpush2.xpose.msra.mxu0 0.0
          %729 = vmatprep.subr.mxu0 0.0
          %730 = vmatpush2.xpose.msra.mxu0 0.0
          %731 = vmatprep.subr.mxu0 0.0
          %732 = vmatpush2.xpose.msra.mxu0 0.0
          %733 = vmatprep.subr.mxu0 0.0
          %734 = vmatpush2.xpose.msra.mxu0 0.0
          %735 = vmatprep.mubr.f32.mxu0 0.0
          %736 = vmatmul.mubr.f32.gmra.mxu0 %v670
          %v737 = vpop.f32.mrf.mxu0
          %v738 = vadd.f32 0.0, %v737
          %v739 = vpop.f32.mrf.mxu0
          %740 = vdwg.mxu0
          %741 = vst [vmem:[#allocation4] sm:$0x1] %v738
        $region64: #{tpu_custom_call.1} parent=43 // pred_fallthru
          _
        %s742 = smul.u32 %s27, 128
        %v743 = vld [vmem:[#allocation3] sm:$0xf]
        %v744 = vld [vmem:[#allocation3 + $0x4] sm:$0xf]
        %v745 = vld [vmem:[#allocation3 + $0x8] sm:$0xf]
        %v746 = vld [vmem:[#allocation3 + $0xc] sm:$0xf]
        %v747 = vld [vmem:[#allocation3 + $0x10] sm:$0xf]
        %v748 = vld [vmem:[#allocation3 + $0x14] sm:$0xf]
        %v749 = vld [vmem:[#allocation3 + $0x18] sm:$0xf]
        %v750 = vld [vmem:[#allocation3 + $0x1c] sm:$0xf]
        %v751 = vld [vmem:[#allocation3 + $0x20] sm:$0xf]
        %v752 = vld [vmem:[#allocation3 + $0x24] sm:$0xf]
        %v753 = vld [vmem:[#allocation3 + $0x28] sm:$0xf]
        %v754 = vld [vmem:[#allocation3 + $0x2c] sm:$0xf]
        %v755 = vld [vmem:[#allocation3 + $0x30] sm:$0xf]
        %v756 = vld [vmem:[#allocation3 + $0x34] sm:$0xf]
        %v757 = vld [vmem:[#allocation3 + $0x38] sm:$0xf]
        %v758 = vld [vmem:[#allocation3 + $0x3c] sm:$0xf]
        %s759 = sshra.s32 %s742, 3
        %s760 = sand.u32 %s742, 7
        %s761 = smul.addr %s759, 4
        %s762 = scalar_lea.vmem [#allocation3], %s761
        %v763 = vld [vmem:[%s762] sm:$0xf]
        %v764 = vld [vmem:[%s762 + $0x4] sm:$0xf]
        %v765 = vld [vmem:[%s762 + $0x8] sm:$0xf]
        %v766 = vld [vmem:[%s762 + $0xc] sm:$0xf]
        %v767 = vld [vmem:[%s762 + $0x10] sm:$0xf]
        %v768 = vld [vmem:[%s762 + $0x14] sm:$0xf]
        %v769 = vld [vmem:[%s762 + $0x18] sm:$0xf]
        %v770 = vld [vmem:[%s762 + $0x1c] sm:$0xf]
        %v771 = vld [vmem:[%s762 + $0x20] sm:$0xf]
        %v772 = vld [vmem:[%s762 + $0x24] sm:$0xf]
        %v773 = vld [vmem:[%s762 + $0x28] sm:$0xf]
        %v774 = vld [vmem:[%s762 + $0x2c] sm:$0xf]
        %v775 = vld [vmem:[%s762 + $0x30] sm:$0xf]
        %v776 = vld [vmem:[%s762 + $0x34] sm:$0xf]
        %v777 = vld [vmem:[%s762 + $0x38] sm:$0xf]
        %v778 = vld [vmem:[%s762 + $0x3c] sm:$0xf]
        %v779 = vunpack.c.l.bf16 %v763
        %v780 = vunpack.c.l.bf16 %v764
        %v781 = vunpack.c.l.bf16 %v765
        %v782 = vunpack.c.l.bf16 %v766
        %v783 = vunpack.c.l.bf16 %v767
        %v784 = vunpack.c.l.bf16 %v768
        %v785 = vunpack.c.l.bf16 %v769
        %v786 = vunpack.c.l.bf16 %v770
        %v787 = vunpack.c.l.bf16 %v771
        %v788 = vunpack.c.l.bf16 %v772
        %v789 = vunpack.c.l.bf16 %v773
        %v790 = vunpack.c.l.bf16 %v774
        %v791 = vunpack.c.l.bf16 %v775
        %v792 = vunpack.c.l.bf16 %v776
        %v793 = vunpack.c.l.bf16 %v777
        %v794 = vunpack.c.l.bf16 %v778
        %v795 = vld [vmem:[%s358] sm:$0x1]
        %v797 = vlaneseq
        %v798 = vshrl.u32 %v797, 7
        %v799 = vsub.s32 0, %v798
        %v800 = vrot.slane %v795, %v799
        %v802 = vmul.f32 %v779, %v800
        %v803 = vmul.f32 %v780, %v800
        %v804 = vmul.f32 %v781, %v800
        %v805 = vmul.f32 %v782, %v800
        %v806 = vmul.f32 %v783, %v800
        %v807 = vmul.f32 %v784, %v800
        %v808 = vmul.f32 %v785, %v800
        %v809 = vmul.f32 %v786, %v800
        %v810 = vmul.f32 %v787, %v800
        %v811 = vmul.f32 %v788, %v800
        %v812 = vmul.f32 %v789, %v800
        %v813 = vmul.f32 %v790, %v800
        %v814 = vmul.f32 %v791, %v800
        %v815 = vmul.f32 %v792, %v800
        %v816 = vmul.f32 %v793, %v800
        %v817 = vmul.f32 %v794, %v800
        %818 = vadd.xlane.f32.xlu0 %v802
        %v819 = vpop.xlane.xlu0 %818
        %820 = vadd.xlane.f32.xlu0 %v803
        %v821 = vpop.xlane.xlu0 %820
        %822 = vadd.xlane.f32.xlu0 %v804
        %v823 = vpop.xlane.xlu0 %822
        %824 = vadd.xlane.f32.xlu0 %v805
        %v825 = vpop.xlane.xlu0 %824
        %826 = vadd.xlane.f32.xlu0 %v806
        %v827 = vpop.xlane.xlu0 %826
        %828 = vadd.xlane.f32.xlu0 %v807
        %v829 = vpop.xlane.xlu0 %828
        %830 = vadd.xlane.f32.xlu0 %v808
        %v831 = vpop.xlane.xlu0 %830
        %832 = vadd.xlane.f32.xlu0 %v809
        %v833 = vpop.xlane.xlu0 %832
        %834 = vadd.xlane.f32.xlu0 %v810
        %v835 = vpop.xlane.xlu0 %834
        %836 = vadd.xlane.f32.xlu0 %v811
        %v837 = vpop.xlane.xlu0 %836
        %838 = vadd.xlane.f32.xlu0 %v812
        %v839 = vpop.xlane.xlu0 %838
        %840 = vadd.xlane.f32.xlu0 %v813
        %v841 = vpop.xlane.xlu0 %840
        %842 = vadd.xlane.f32.xlu0 %v814
        %v843 = vpop.xlane.xlu0 %842
        %844 = vadd.xlane.f32.xlu0 %v815
        %v845 = vpop.xlane.xlu0 %844
        %846 = vadd.xlane.f32.xlu0 %v816
        %v847 = vpop.xlane.xlu0 %846
        %848 = vadd.xlane.f32.xlu0 %v817
        %v849 = vpop.xlane.xlu0 %848
        %v850 = vld [vmem:[#allocation4] sm:$0x1]
        %v852 = vlaneseq
        %v853 = vshrl.u32 %v852, 7
        %v854 = vsub.s32 0, %v853
        %v855 = vrot.slane %v850, %v854
        %v857 = vadd.f32 %v819, %v855
        %v858 = vadd.f32 %v821, %v855
        %v859 = vadd.f32 %v823, %v855
        %v860 = vadd.f32 %v825, %v855
        %v861 = vadd.f32 %v827, %v855
        %v862 = vadd.f32 %v829, %v855
        %v863 = vadd.f32 %v831, %v855
        %v864 = vadd.f32 %v833, %v855
        %v865 = vadd.f32 %v835, %v855
        %v866 = vadd.f32 %v837, %v855
        %v867 = vadd.f32 %v839, %v855
        %v868 = vadd.f32 %v841, %v855
        %v869 = vadd.f32 %v843, %v855
        %v870 = vadd.f32 %v845, %v855
        %v871 = vadd.f32 %v847, %v855
        %v872 = vadd.f32 %v849, %v855
        %vm873 = vcmp.gt.f32.partialorder %v857, 0.0
        %vm874 = vcmp.gt.f32.partialorder %v858, 0.0
        %vm875 = vcmp.gt.f32.partialorder %v859, 0.0
        %vm876 = vcmp.gt.f32.partialorder %v860, 0.0
        %vm877 = vcmp.gt.f32.partialorder %v861, 0.0
        %vm878 = vcmp.gt.f32.partialorder %v862, 0.0
        %vm879 = vcmp.gt.f32.partialorder %v863, 0.0
        %vm880 = vcmp.gt.f32.partialorder %v864, 0.0
        %vm881 = vcmp.gt.f32.partialorder %v865, 0.0
        %vm882 = vcmp.gt.f32.partialorder %v866, 0.0
        %vm883 = vcmp.gt.f32.partialorder %v867, 0.0
        %vm884 = vcmp.gt.f32.partialorder %v868, 0.0
        %vm885 = vcmp.gt.f32.partialorder %v869, 0.0
        %vm886 = vcmp.gt.f32.partialorder %v870, 0.0
        %vm887 = vcmp.gt.f32.partialorder %v871, 0.0
        %vm888 = vcmp.gt.f32.partialorder %v872, 0.0
        %v889 = vmul.f32 %v857, 0.2
        %v890 = vmul.f32 %v858, 0.2
        %v891 = vmul.f32 %v859, 0.2
        %v892 = vmul.f32 %v860, 0.2
        %v893 = vmul.f32 %v861, 0.2
        %v894 = vmul.f32 %v862, 0.2
        %v895 = vmul.f32 %v863, 0.2
        %v896 = vmul.f32 %v864, 0.2
        %v897 = vmul.f32 %v865, 0.2
        %v898 = vmul.f32 %v866, 0.2
        %v899 = vmul.f32 %v867, 0.2
        %v900 = vmul.f32 %v868, 0.2
        %v901 = vmul.f32 %v869, 0.2
        %v902 = vmul.f32 %v870, 0.2
        %v903 = vmul.f32 %v871, 0.2
        %v904 = vmul.f32 %v872, 0.2
        %v905 = vsel %vm873, %v857, %v889
        %v906 = vsel %vm874, %v858, %v890
        %v907 = vsel %vm875, %v859, %v891
        %v908 = vsel %vm876, %v860, %v892
        %v909 = vsel %vm877, %v861, %v893
        %v910 = vsel %vm878, %v862, %v894
        %v911 = vsel %vm879, %v863, %v895
        %v912 = vsel %vm880, %v864, %v896
        %v913 = vsel %vm881, %v865, %v897
        %v914 = vsel %vm882, %v866, %v898
        %v915 = vsel %vm883, %v867, %v899
        %v916 = vsel %vm884, %v868, %v900
        %v917 = vsel %vm885, %v869, %v901
        %v918 = vsel %vm886, %v870, %v902
        %v919 = vsel %vm887, %v871, %v903
        %v920 = vsel %vm888, %v872, %v904
        %v921 = vld [vmem:[#allocation5] sm:$0xff]
        %v922 = vld [vmem:[#allocation5 + $0x8] sm:$0xff]
        %v923 = vld [vmem:[#allocation5 + $0x10] sm:$0xff]
        %v924 = vld [vmem:[#allocation5 + $0x18] sm:$0xff]
        %v925 = vld [vmem:[#allocation5 + $0x20] sm:$0xff]
        %v926 = vld [vmem:[#allocation5 + $0x28] sm:$0xff]
        %v927 = vld [vmem:[#allocation5 + $0x30] sm:$0xff]
        %v928 = vld [vmem:[#allocation5 + $0x38] sm:$0xff]
        %v929 = vld [vmem:[#allocation5 + $0x40] sm:$0xff]
        %v930 = vld [vmem:[#allocation5 + $0x48] sm:$0xff]
        %v931 = vld [vmem:[#allocation5 + $0x50] sm:$0xff]
        %v932 = vld [vmem:[#allocation5 + $0x58] sm:$0xff]
        %v933 = vld [vmem:[#allocation5 + $0x60] sm:$0xff]
        %v934 = vld [vmem:[#allocation5 + $0x68] sm:$0xff]
        %v935 = vld [vmem:[#allocation5 + $0x70] sm:$0xff]
        %v936 = vld [vmem:[#allocation5 + $0x78] sm:$0xff]
        %v937 = vadd.f32 %v905, %v921
        %v938 = vadd.f32 %v906, %v922
        %v939 = vadd.f32 %v907, %v923
        %v940 = vadd.f32 %v908, %v924
        %v941 = vadd.f32 %v909, %v925
        %v942 = vadd.f32 %v910, %v926
        %v943 = vadd.f32 %v911, %v927
        %v944 = vadd.f32 %v912, %v928
        %v945 = vadd.f32 %v913, %v929
        %v946 = vadd.f32 %v914, %v930
        %v947 = vadd.f32 %v915, %v931
        %v948 = vadd.f32 %v916, %v932
        %v949 = vadd.f32 %v917, %v933
        %v950 = vadd.f32 %v918, %v934
        %v951 = vadd.f32 %v919, %v935
        %v952 = vadd.f32 %v920, %v936
        %953 = vmax.xlane.f32.xlu0 %v937
        %v954 = vpop.xlane.xlu0 %953
        %955 = vmax.xlane.f32.xlu0 %v938
        %v956 = vpop.xlane.xlu0 %955
        %957 = vmax.xlane.f32.xlu0 %v939
        %v958 = vpop.xlane.xlu0 %957
        %959 = vmax.xlane.f32.xlu0 %v940
        %v960 = vpop.xlane.xlu0 %959
        %961 = vmax.xlane.f32.xlu0 %v941
        %v962 = vpop.xlane.xlu0 %961
        %963 = vmax.xlane.f32.xlu0 %v942
        %v964 = vpop.xlane.xlu0 %963
        %965 = vmax.xlane.f32.xlu0 %v943
        %v966 = vpop.xlane.xlu0 %965
        %967 = vmax.xlane.f32.xlu0 %v944
        %v968 = vpop.xlane.xlu0 %967
        %969 = vmax.xlane.f32.xlu0 %v945
        %v970 = vpop.xlane.xlu0 %969
        %971 = vmax.xlane.f32.xlu0 %v946
        %v972 = vpop.xlane.xlu0 %971
        %973 = vmax.xlane.f32.xlu0 %v947
        %v974 = vpop.xlane.xlu0 %973
        %975 = vmax.xlane.f32.xlu0 %v948
        %v976 = vpop.xlane.xlu0 %975
        %977 = vmax.xlane.f32.xlu0 %v949
        %v978 = vpop.xlane.xlu0 %977
        %979 = vmax.xlane.f32.xlu0 %v950
        %v980 = vpop.xlane.xlu0 %979
        %981 = vmax.xlane.f32.xlu0 %v951
        %v982 = vpop.xlane.xlu0 %981
        %983 = vmax.xlane.f32.xlu0 %v952
        %v984 = vpop.xlane.xlu0 %983
        %v985 = vsub.f32 %v937, %v954
        %v986 = vsub.f32 %v938, %v956
        %v987 = vsub.f32 %v939, %v958
        %v988 = vsub.f32 %v940, %v960
        %v989 = vsub.f32 %v941, %v962
        %v990 = vsub.f32 %v942, %v964
        %v991 = vsub.f32 %v943, %v966
        %v992 = vsub.f32 %v944, %v968
        %v993 = vsub.f32 %v945, %v970
        %v994 = vsub.f32 %v946, %v972
        %v995 = vsub.f32 %v947, %v974
        %v996 = vsub.f32 %v948, %v976
        %v997 = vsub.f32 %v949, %v978
        %v998 = vsub.f32 %v950, %v980
        %v999 = vsub.f32 %v951, %v982
        %v1000 = vsub.f32 %v952, %v984
        %v1001 = vmul.f32 %v985, 1.442695
        %v1002 = vpow.pop %v1001
        %v1003 = vmul.f32 %v986, 1.442695
        %v1004 = vpow.pop %v1003
        %v1005 = vmul.f32 %v987, 1.442695
        %v1006 = vpow.pop %v1005
        %v1007 = vmul.f32 %v988, 1.442695
        %v1008 = vpow.pop %v1007
        %v1009 = vmul.f32 %v989, 1.442695
        %v1010 = vpow.pop %v1009
        %v1011 = vmul.f32 %v990, 1.442695
        %v1012 = vpow.pop %v1011
        %v1013 = vmul.f32 %v991, 1.442695
        %v1014 = vpow.pop %v1013
        %v1015 = vmul.f32 %v992, 1.442695
        %v1016 = vpow.pop %v1015
        %v1017 = vmul.f32 %v993, 1.442695
        %v1018 = vpow.pop %v1017
        %v1019 = vmul.f32 %v994, 1.442695
        %v1020 = vpow.pop %v1019
        %v1021 = vmul.f32 %v995, 1.442695
        %v1022 = vpow.pop %v1021
        %v1023 = vmul.f32 %v996, 1.442695
        %v1024 = vpow.pop %v1023
        %v1025 = vmul.f32 %v997, 1.442695
        %v1026 = vpow.pop %v1025
        %v1027 = vmul.f32 %v998, 1.442695
        %v1028 = vpow.pop %v1027
        %v1029 = vmul.f32 %v999, 1.442695
        %v1030 = vpow.pop %v1029
        %v1031 = vmul.f32 %v1000, 1.442695
        %v1032 = vpow.pop %v1031
        %1033 = vadd.xlane.f32.xlu0 %v1002
        %v1034 = vpop.xlane.xlu0 %1033
        %1035 = vadd.xlane.f32.xlu0 %v1004
        %v1036 = vpop.xlane.xlu0 %1035
        %1037 = vadd.xlane.f32.xlu0 %v1006
        %v1038 = vpop.xlane.xlu0 %1037
        %1039 = vadd.xlane.f32.xlu0 %v1008
        %v1040 = vpop.xlane.xlu0 %1039
        %1041 = vadd.xlane.f32.xlu0 %v1010
        %v1042 = vpop.xlane.xlu0 %1041
        %1043 = vadd.xlane.f32.xlu0 %v1012
        %v1044 = vpop.xlane.xlu0 %1043
        %1045 = vadd.xlane.f32.xlu0 %v1014
        %v1046 = vpop.xlane.xlu0 %1045
        %1047 = vadd.xlane.f32.xlu0 %v1016
        %v1048 = vpop.xlane.xlu0 %1047
        %1049 = vadd.xlane.f32.xlu0 %v1018
        %v1050 = vpop.xlane.xlu0 %1049
        %1051 = vadd.xlane.f32.xlu0 %v1020
        %v1052 = vpop.xlane.xlu0 %1051
        %1053 = vadd.xlane.f32.xlu0 %v1022
        %v1054 = vpop.xlane.xlu0 %1053
        %1055 = vadd.xlane.f32.xlu0 %v1024
        %v1056 = vpop.xlane.xlu0 %1055
        %1057 = vadd.xlane.f32.xlu0 %v1026
        %v1058 = vpop.xlane.xlu0 %1057
        %1059 = vadd.xlane.f32.xlu0 %v1028
        %v1060 = vpop.xlane.xlu0 %1059
        %1061 = vadd.xlane.f32.xlu0 %v1030
        %v1062 = vpop.xlane.xlu0 %1061
        %1063 = vadd.xlane.f32.xlu0 %v1032
        %v1064 = vpop.xlane.xlu0 %1063
        %v1065 = vpack.c.bf16 %v1004, %v1002
        %v1066 = vpack.c.bf16 %v1008, %v1006
        %v1067 = vpack.c.bf16 %v1012, %v1010
        %v1068 = vpack.c.bf16 %v1016, %v1014
        %v1069 = vpack.c.bf16 %v1020, %v1018
        %v1070 = vpack.c.bf16 %v1024, %v1022
        %v1071 = vpack.c.bf16 %v1028, %v1026
        %v1072 = vpack.c.bf16 %v1032, %v1030
        %v1089 = vunpack.c.l.b16 %v743
        %v1090 = vunpack.c.l.b16 %v744
        %v1091 = vunpack.c.l.b16 %v745
        %v1092 = vunpack.c.l.b16 %v746
        %v1093 = vunpack.c.l.b16 %v747
        %v1094 = vunpack.c.l.b16 %v748
        %v1095 = vunpack.c.l.b16 %v749
        %v1096 = vunpack.c.l.b16 %v750
        %v1097 = vunpack.c.l.b16 %v751
        %v1098 = vunpack.c.l.b16 %v752
        %v1099 = vunpack.c.l.b16 %v753
        %v1100 = vunpack.c.l.b16 %v754
        %v1101 = vunpack.c.l.b16 %v755
        %v1102 = vunpack.c.l.b16 %v756
        %v1103 = vunpack.c.l.b16 %v757
        %v1104 = vunpack.c.l.b16 %v758
        %v1105 = vpack.c.b16 %v1090, %v1089
        %v1106 = vpack.c.b16 %v1092, %v1091
        %v1107 = vpack.c.b16 %v1094, %v1093
        %v1108 = vpack.c.b16 %v1096, %v1095
        %v1109 = vpack.c.b16 %v1098, %v1097
        %v1110 = vpack.c.b16 %v1100, %v1099
        %v1111 = vpack.c.b16 %v1102, %v1101
        %v1112 = vpack.c.b16 %v1104, %v1103
        %1121 = vmatprep.subr.bf16.mxu0 0
        %1122 = vmatpush1.bf16.msra.mxu0 %v1112
        %1123 = vmatprep.subr.bf16.mxu0 0
        %1124 = vmatpush1.bf16.msra.mxu0 %v1111
        %1125 = vmatprep.subr.bf16.mxu0 0
        %1126 = vmatpush1.bf16.msra.mxu0 %v1110
        %1127 = vmatprep.subr.bf16.mxu0 0
        %1128 = vmatpush1.bf16.msra.mxu0 %v1109
        %1129 = vmatprep.subr.bf16.mxu0 0
        %1130 = vmatpush1.bf16.msra.mxu0 %v1108
        %1131 = vmatprep.subr.bf16.mxu0 0
        %1132 = vmatpush1.bf16.msra.mxu0 %v1107
        %1133 = vmatprep.subr.bf16.mxu0 0
        %1134 = vmatpush1.bf16.msra.mxu0 %v1106
        %1135 = vmatprep.subr.bf16.mxu0 0
        %1136 = vmatpush1.bf16.msra.mxu0 %v1105
        %1137 = vmatprep.subr.bf16.mxu0 0
        %1138 = vmatpush2.bf16.msra.mxu0 0
        %1139 = vmatprep.subr.bf16.mxu0 0
        %1140 = vmatpush2.bf16.msra.mxu0 0
        %1141 = vmatprep.subr.bf16.mxu0 0
        %1142 = vmatpush2.bf16.msra.mxu0 0
        %1143 = vmatprep.subr.bf16.mxu0 0
        %1144 = vmatpush2.bf16.msra.mxu0 0
        %1145 = vmatprep.subr.bf16.mxu0 0
        %1146 = vmatpush2.bf16.msra.mxu0 0
        %1147 = vmatprep.subr.bf16.mxu0 0
        %1148 = vmatpush2.bf16.msra.mxu0 0
        %1149 = vmatprep.subr.bf16.mxu0 0
        %1150 = vmatpush2.bf16.msra.mxu0 0
        %1151 = vmatprep.subr.bf16.mxu0 0
        %1152 = vmatpush2.bf16.msra.mxu0 0
        %1153 = vmatprep.mubr.bf16.mxu0 0
        %1154 = vmatmul.mubr.bf16.gmra.mxu0 %v1065
        %v1155 = vpop.f32.mrf.mxu0
        %v1156 = vadd.f32 0.0, %v1155
        %v1157 = vpop.f32.mrf.mxu0
        %v1158 = vpop.f32.mrf.mxu0
        %v1159 = vadd.f32 0.0, %v1158
        %v1160 = vpop.f32.mrf.mxu0
        %1161 = vmatprep.mubr.bf16.mxu0 0
        %1162 = vmatmul.mubr.bf16.gmra.mxu0 %v1066
        %v1163 = vpop.f32.mrf.mxu0
        %v1164 = vadd.f32 0.0, %v1163
        %v1165 = vpop.f32.mrf.mxu0
        %v1166 = vpop.f32.mrf.mxu0
        %v1167 = vadd.f32 0.0, %v1166
        %v1168 = vpop.f32.mrf.mxu0
        %1169 = vmatprep.mubr.bf16.mxu0 0
        %1170 = vmatmul.mubr.bf16.gmra.mxu0 %v1067
        %v1171 = vpop.f32.mrf.mxu0
        %v1172 = vadd.f32 0.0, %v1171
        %v1173 = vpop.f32.mrf.mxu0
        %v1174 = vpop.f32.mrf.mxu0
        %v1175 = vadd.f32 0.0, %v1174
        %v1176 = vpop.f32.mrf.mxu0
        %1177 = vmatprep.mubr.bf16.mxu0 0
        %1178 = vmatmul.mubr.bf16.gmra.mxu0 %v1068
        %v1179 = vpop.f32.mrf.mxu0
        %v1180 = vadd.f32 0.0, %v1179
        %v1181 = vpop.f32.mrf.mxu0
        %v1182 = vpop.f32.mrf.mxu0
        %v1183 = vadd.f32 0.0, %v1182
        %v1184 = vpop.f32.mrf.mxu0
        %1185 = vmatprep.mubr.bf16.mxu0 0
        %1186 = vmatmul.mubr.bf16.gmra.mxu0 %v1069
        %v1187 = vpop.f32.mrf.mxu0
        %v1188 = vadd.f32 0.0, %v1187
        %v1189 = vpop.f32.mrf.mxu0
        %v1190 = vpop.f32.mrf.mxu0
        %v1191 = vadd.f32 0.0, %v1190
        %v1192 = vpop.f32.mrf.mxu0
        %1193 = vmatprep.mubr.bf16.mxu0 0
        %1194 = vmatmul.mubr.bf16.gmra.mxu0 %v1070
        %v1195 = vpop.f32.mrf.mxu0
        %v1196 = vadd.f32 0.0, %v1195
        %v1197 = vpop.f32.mrf.mxu0
        %v1198 = vpop.f32.mrf.mxu0
        %v1199 = vadd.f32 0.0, %v1198
        %v1200 = vpop.f32.mrf.mxu0
        %1201 = vmatprep.mubr.bf16.mxu0 0
        %1202 = vmatmul.mubr.bf16.gmra.mxu0 %v1071
        %v1203 = vpop.f32.mrf.mxu0
        %v1204 = vadd.f32 0.0, %v1203
        %v1205 = vpop.f32.mrf.mxu0
        %v1206 = vpop.f32.mrf.mxu0
        %v1207 = vadd.f32 0.0, %v1206
        %v1208 = vpop.f32.mrf.mxu0
        %1209 = vmatprep.mubr.bf16.mxu0 0
        %1210 = vmatmul.mubr.bf16.gmra.mxu0 %v1072
        %v1211 = vpop.f32.mrf.mxu0
        %v1212 = vadd.f32 0.0, %v1211
        %v1213 = vpop.f32.mrf.mxu0
        %v1214 = vpop.f32.mrf.mxu0
        %v1215 = vadd.f32 0.0, %v1214
        %v1216 = vpop.f32.mrf.mxu0
        %1217 = vdwg.mxu0
        %v1218 = vrcp.pop %v1034
        %v1219 = vrcp.pop %v1036
        %v1220 = vrcp.pop %v1038
        %v1221 = vrcp.pop %v1040
        %v1222 = vrcp.pop %v1042
        %v1223 = vrcp.pop %v1044
        %v1224 = vrcp.pop %v1046
        %v1225 = vrcp.pop %v1048
        %v1226 = vrcp.pop %v1050
        %v1227 = vrcp.pop %v1052
        %v1228 = vrcp.pop %v1054
        %v1229 = vrcp.pop %v1056
        %v1230 = vrcp.pop %v1058
        %v1231 = vrcp.pop %v1060
        %v1232 = vrcp.pop %v1062
        %v1233 = vrcp.pop %v1064
        %v1234 = vmul.f32 %v1156, %v1218
        %v1235 = vmul.f32 %v1159, %v1219
        %v1236 = vmul.f32 %v1164, %v1220
        %v1237 = vmul.f32 %v1167, %v1221
        %v1238 = vmul.f32 %v1172, %v1222
        %v1239 = vmul.f32 %v1175, %v1223
        %v1240 = vmul.f32 %v1180, %v1224
        %v1241 = vmul.f32 %v1183, %v1225
        %v1242 = vmul.f32 %v1188, %v1226
        %v1243 = vmul.f32 %v1191, %v1227
        %v1244 = vmul.f32 %v1196, %v1228
        %v1245 = vmul.f32 %v1199, %v1229
        %v1246 = vmul.f32 %v1204, %v1230
        %v1247 = vmul.f32 %v1207, %v1231
        %v1248 = vmul.f32 %v1212, %v1232
        %v1249 = vmul.f32 %v1215, %v1233
        %v1250 = vld [vmem:[%s361] sm:$0x1]
        %v1252 = vlaneseq
        %v1253 = vshrl.u32 %v1252, 7
        %v1254 = vsub.s32 0, %v1253
        %v1255 = vrot.slane %v1250, %v1254
        %v1257 = vadd.f32 %v1234, %v1255
        %v1258 = vadd.f32 %v1235, %v1255
        %v1259 = vadd.f32 %v1236, %v1255
        %v1260 = vadd.f32 %v1237, %v1255
        %v1261 = vadd.f32 %v1238, %v1255
        %v1262 = vadd.f32 %v1239, %v1255
        %v1263 = vadd.f32 %v1240, %v1255
        %v1264 = vadd.f32 %v1241, %v1255
        %v1265 = vadd.f32 %v1242, %v1255
        %v1266 = vadd.f32 %v1243, %v1255
        %v1267 = vadd.f32 %v1244, %v1255
        %v1268 = vadd.f32 %v1245, %v1255
        %v1269 = vadd.f32 %v1246, %v1255
        %v1270 = vadd.f32 %v1247, %v1255
        %v1271 = vadd.f32 %v1248, %v1255
        %v1272 = vadd.f32 %v1249, %v1255
        %v1273 = vmax.f32 %v1257, 0.0
        %v1274 = vmax.f32 %v1258, 0.0
        %v1275 = vmax.f32 %v1259, 0.0
        %v1276 = vmax.f32 %v1260, 0.0
        %v1277 = vmax.f32 %v1261, 0.0
        %v1278 = vmax.f32 %v1262, 0.0
        %v1279 = vmax.f32 %v1263, 0.0
        %v1280 = vmax.f32 %v1264, 0.0
        %v1281 = vmax.f32 %v1265, 0.0
        %v1282 = vmax.f32 %v1266, 0.0
        %v1283 = vmax.f32 %v1267, 0.0
        %v1284 = vmax.f32 %v1268, 0.0
        %v1285 = vmax.f32 %v1269, 0.0
        %v1286 = vmax.f32 %v1270, 0.0
        %v1287 = vmax.f32 %v1271, 0.0
        %v1288 = vmax.f32 %v1272, 0.0
        %1289 = vst [vmem:[%s351] sm:$0xff] %v1273
        %1290 = vst [vmem:[%s351 + $0x8] sm:$0xff] %v1274
        %1291 = vst [vmem:[%s351 + $0x10] sm:$0xff] %v1275
        %1292 = vst [vmem:[%s351 + $0x18] sm:$0xff] %v1276
        %1293 = vst [vmem:[%s351 + $0x20] sm:$0xff] %v1277
        %1294 = vst [vmem:[%s351 + $0x28] sm:$0xff] %v1278
        %1295 = vst [vmem:[%s351 + $0x30] sm:$0xff] %v1279
        %1296 = vst [vmem:[%s351 + $0x38] sm:$0xff] %v1280
        %1297 = vst [vmem:[%s351 + $0x40] sm:$0xff] %v1281
        %1298 = vst [vmem:[%s351 + $0x48] sm:$0xff] %v1282
        %1299 = vst [vmem:[%s351 + $0x50] sm:$0xff] %v1283
        %1300 = vst [vmem:[%s351 + $0x58] sm:$0xff] %v1284
        %1301 = vst [vmem:[%s351 + $0x60] sm:$0xff] %v1285
        %1302 = vst [vmem:[%s351 + $0x68] sm:$0xff] %v1286
        %1303 = vst [vmem:[%s351 + $0x70] sm:$0xff] %v1287
        %1304 = vst [vmem:[%s351 + $0x78] sm:$0xff] %v1288
        %s1305 = scalar_lea.vmem [#allocation2], %s742
        %1306 = vst [vmem:[%s1305] sm:$0xff] %v1273
        %1307 = vst [vmem:[%s1305 + $0x8] sm:$0xff] %v1274
        %1308 = vst [vmem:[%s1305 + $0x10] sm:$0xff] %v1275
        %1309 = vst [vmem:[%s1305 + $0x18] sm:$0xff] %v1276
        %1310 = vst [vmem:[%s1305 + $0x20] sm:$0xff] %v1277
        %1311 = vst [vmem:[%s1305 + $0x28] sm:$0xff] %v1278
        %1312 = vst [vmem:[%s1305 + $0x30] sm:$0xff] %v1279
        %1313 = vst [vmem:[%s1305 + $0x38] sm:$0xff] %v1280
        %1314 = vst [vmem:[%s1305 + $0x40] sm:$0xff] %v1281
        %1315 = vst [vmem:[%s1305 + $0x48] sm:$0xff] %v1282
        %1316 = vst [vmem:[%s1305 + $0x50] sm:$0xff] %v1283
        %1317 = vst [vmem:[%s1305 + $0x58] sm:$0xff] %v1284
        %1318 = vst [vmem:[%s1305 + $0x60] sm:$0xff] %v1285
        %1319 = vst [vmem:[%s1305 + $0x68] sm:$0xff] %v1286
        %1320 = vst [vmem:[%s1305 + $0x70] sm:$0xff] %v1287
        %1321 = vst [vmem:[%s1305 + $0x78] sm:$0xff] %v1288
        %s1322 = sand.u32 %s195, 1
        %s1323 = scalar_lea.sflag [#allocation7], %s1322
        %s1324 = sand.u32 %s195, 1
        %s1325 = smul.addr %s1324, 128
        %s1326 = scalar_lea.vmem [#allocation11], %s1325
        // Predicated region
        $region65: #{tpu_custom_call.1} parent=43 // pred_check
          %p1327 = pneg %p205
        $region66: #{tpu_custom_call.1} parent=43 // pred_check_branch
          %1329 = sbr.rel (%p1327) target = $region68
        $region67: #{tpu_custom_call.1} parent=43 // pred_region
          %s1330 = smul.u32 16, %s27
          %s1332 = ssub.s32 2048, 2048
          %1333 = vsyncadd %s1323, %s1332
          %s1334 = smul.addr %s26, 16
          %s1335 = sadd.s32 %s1330, %s1334
          %s1336 = smul.addr %s1335, 128
          %s1337 = scalar_lea.hbm %s6, %s1336
          %s1338 = sshll.u32 %s1326, 4
          %s1339 = int_to_ptr.vmem [resolvable:$true] %s1338
          %1344 = dma.vmem_to_hbm [thread:$0]  %s1339, 2048, %s1337, %s1323, 128, 128, 8
        $region68: #{tpu_custom_call.1} parent=43 // pred_fallthru
          _
      $region44: #{tpu_custom_call.1} parent=5 // pred_fallthru
        _
      %p1345 = scmp.le.s32.totalorder 2, %s17
      // Predicated region
      $region69: #{tpu_custom_call.1} parent=5 // pred_check
        %p1346 = pneg %p1345
      $region70: #{tpu_custom_call.1} parent=5 // pred_check_branch
        %1348 = sbr.rel (%p1346) target = $region72
      $region71: #{tpu_custom_call.1} parent=5 // pred_region
        %s1349 = ssub.s32 %s17, 2
        // Predicated region
        $region73: #{tpu_custom_call.1} parent=71 // pred_check
          %p1350 = pneg %p211
        $region74: #{tpu_custom_call.1} parent=71 // pred_check_branch
          %1352 = sbr.rel (%p1350) target = $region76
        $region75: #{tpu_custom_call.1} parent=71 // pred_region
          %s1353 = sand.u32 %s196, 1
          %s1354 = scalar_lea.sflag [#allocation7], %s1353
          %s1355 = sand.u32 %s196, 1
          %s1356 = smul.addr %s1355, 128
          %s1357 = scalar_lea.vmem [#allocation11], %s1356
          %1358 = dma.done %s1354, 2048
        $region76: #{tpu_custom_call.1} parent=71 // pred_fallthru
          _
      $region72: #{tpu_custom_call.1} parent=5 // pred_fallthru
        _
    $region6: #{tpu_custom_call.1} parent=1 // loop_footer
      %s21 = sadd.s32 1, %s17
    $region7: #{tpu_custom_call.1} parent=1 // loop_footer_branch
      %16 = sbr.rel target = $region3
    $region8: #{tpu_custom_call.1} parent=1 // loop_exit
      _
    %1359 = vsyncpa [#allocation6], 1
    %s1360 = scalar_lea.sflag [#allocation6], 1
    %1361 = vsyncpa %s1360, 1
    %1362 = vsyncpa [#allocation9], 1
    %1363 = vsyncpa [#allocation7], 1
    %s1364 = scalar_lea.sflag [#allocation7], 1
    %1365 = vsyncpa %s1364, 1

</llo_original>
